<compile_context>
chip_gen: v7x
topology: tpu7x:2x2x1
jax: 0.10.0
libtpu: 0.0.40
codegen_flags: <defaults>
</compile_context>

<pallas_src>
import functools

import jax
import jax.numpy as jnp
from jax import lax
from jax.experimental import pallas as pl
from jax.experimental.pallas import tpu as pltpu

EPS = 1e-5
LANE = 128


def _round_up(x, m):
    return (x + m - 1) // m * m


def _pad_axis(a, axis, new_size):
    pad = [(0, 0)] * a.ndim
    pad[axis] = (0, new_size - a.shape[axis])
    return jnp.pad(a, pad)


# ----------------------------------------------------------------------------
# Kernel A: fused 1x1 reduce + BN + ReLU + 3x3 grouped conv + BN + ReLU
#           (one batch image per grid step; flat lane-dense in/out)
# ----------------------------------------------------------------------------
def _reduce_split_kernel(xp_ref, mask_ref, wr_ref, sr_ref, br_ref,
                         w3_ref, ss_ref, bs_ref, o_ref, *, Wp, H):
    # xp_ref : (1, Hp*Wp, Cin_p) bf16  -- spatially zero-padded input, flat rows
    # o_ref  : (1, H*Wp,  D_p)   bf16  -- conv output in the (H, Wp) frame;
    #                                     columns >= W are garbage, dropped outside
    xp = xp_ref[0]

    # conv_reduce (1x1) + bn_reduce + relu, f32 accumulation / affine
    y1 = jnp.dot(xp, wr_ref[...], preferred_element_type=jnp.float32)
    y1 = jnp.maximum(y1 * sr_ref[...] + br_ref[...], 0.0)
    # re-zero the spatial padding ring: in the reference module, zero padding
    # belongs to conv_split, i.e. it is applied AFTER bn_reduce + relu.
    y1 = (y1 * mask_ref[...]).astype(jnp.bfloat16)

    # 3x3 grouped conv as 9 tap matmuls against the block-diagonal dense weight.
    # Each tap is a contiguous flat-row slice at a static offset ky*Wp + kx
    # (no 2-D strided slice + reshape -> no per-tap relayout copies).
    L = H * Wp
    dp = w3_ref.shape[-1]
    acc = jnp.zeros((L, dp), jnp.float32)
    for ky in range(3):
        for kx in range(3):
            off = ky * Wp + kx
            acc = acc + jnp.dot(y1[off:off + L, :], w3_ref[ky * 3 + kx],
                                preferred_element_type=jnp.float32)

    y2 = jnp.maximum(acc * ss_ref[...] + bs_ref[...], 0.0)
    o_ref[...] = y2.reshape(1, L, dp).astype(o_ref.dtype)


def reduce_split(xpad_flat, mask, w_reduce, s_reduce, b_reduce,
                 w3_dense, s_split, b_split, *, Hp, Wp, H):
    N, hw, cin_p = xpad_flat.shape
    dp = w3_dense.shape[-1]
    kern = functools.partial(_reduce_split_kernel, Wp=Wp, H=H)
    return pl.pallas_call(
        kern,
        out_shape=jax.ShapeDtypeStruct((N, H * Wp, dp), jnp.bfloat16),
        grid_spec=pltpu.PrefetchScalarGridSpec(
            num_scalar_prefetch=0,
            grid=(N,),
            in_specs=[
                pl.BlockSpec((1, hw, cin_p), lambda n: (n, 0, 0)),
                pl.BlockSpec((hw, 1), lambda n: (0, 0)),
                pl.BlockSpec((cin_p, dp), lambda n: (0, 0)),
                pl.BlockSpec((1, dp), lambda n: (0, 0)),
                pl.BlockSpec((1, dp), lambda n: (0, 0)),
                pl.BlockSpec((9, dp, dp), lambda n: (0, 0, 0)),
                pl.BlockSpec((1, dp), lambda n: (0, 0)),
                pl.BlockSpec((1, dp), lambda n: (0, 0)),
            ],
            out_specs=pl.BlockSpec((1, H * Wp, dp), lambda n: (n, 0, 0)),
        ),
        compiler_params=pltpu.CompilerParams(dimension_semantics=("parallel",)),
    )(xpad_flat, mask, w_reduce, s_reduce, b_reduce, w3_dense, s_split, b_split)


# ----------------------------------------------------------------------------
# Kernel B: fused conv_expand + bn_expand + shortcut(1x1 conv + bn)
#           + residual add + ReLU   (flat lane-dense matmuls, tm<=256)
# ----------------------------------------------------------------------------
def _expand_shortcut_kernel(y_ref, we_ref, se_ref, be_ref,
                            xs_ref, ws_ref, ss_ref, bs_ref, o_ref):
    bott = jnp.dot(y_ref[...], we_ref[...], preferred_element_type=jnp.float32)
    bott = bott * se_ref[...] + be_ref[...]
    res = jnp.dot(xs_ref[...], ws_ref[...], preferred_element_type=jnp.float32)
    res = res * ss_ref[...] + bs_ref[...]
    o_ref[...] = jnp.maximum(bott + res, 0.0).astype(o_ref.dtype)


def expand_plus_shortcut(y_flat, we, se, be, xs_flat, ws, ss, bs, *, tm=256):
    M, dp = y_flat.shape
    cin_p = xs_flat.shape[1]
    cout_p = we.shape[1]
    if M < tm:
        tm = _round_up(M, 16)
    Mp = _round_up(M, tm)
    if Mp != M:
        y_flat = _pad_axis(y_flat, 0, Mp)
        xs_flat = _pad_axis(xs_flat, 0, Mp)
    out = pl.pallas_call(
        _expand_shortcut_kernel,
        out_shape=jax.ShapeDtypeStruct((Mp, cout_p), jnp.float32),
        grid_spec=pltpu.PrefetchScalarGridSpec(
            num_scalar_prefetch=0,
            grid=(Mp // tm,),
            in_specs=[
                pl.BlockSpec((tm, dp), lambda i: (i, 0)),
                pl.BlockSpec((dp, cout_p), lambda i: (0, 0)),
                pl.BlockSpec((1, cout_p), lambda i: (0, 0)),
                pl.BlockSpec((1, cout_p), lambda i: (0, 0)),
                pl.BlockSpec((tm, cin_p), lambda i: (i, 0)),
                pl.BlockSpec((cin_p, cout_p), lambda i: (0, 0)),
                pl.BlockSpec((1, cout_p), lambda i: (0, 0)),
                pl.BlockSpec((1, cout_p), lambda i: (0, 0)),
            ],
            out_specs=pl.BlockSpec((tm, cout_p), lambda i: (i, 0)),
        ),
        compiler_params=pltpu.CompilerParams(dimension_semantics=("parallel",)),
    )(y_flat, we, se, be, xs_flat, ws, ss, bs)
    return out[:M]


# ----------------------------------------------------------------------------
# Glue: full bottleneck forward (matches PyTorch ResNeXtBottleneck.forward)
# ----------------------------------------------------------------------------
def resnext_bottleneck_forward(x_nchw, p, stride):
    x = jnp.transpose(x_nchw, (0, 2, 3, 1)).astype(jnp.float32)   # NCHW -> NHWC
    N, H, W, cin = x.shape
    cin_p = p["w_reduce"].shape[0]
    dp = p["w_reduce"].shape[1]
    cout = p["cout"]

    # pad channels to lane width; pad spatially (1 top/left/right, 2 bottom so
    # the flat tap slices stay in-bounds), flatten rows, cast to bf16.
    Hp, Wp = H + 3, W + 2
    x_p = _pad_axis(x, 3, cin_p)
    xpad = jnp.pad(x_p, ((0, 0), (1, 2), (1, 1), (0, 0)))
    xpad_flat = xpad.reshape(N, Hp * Wp, cin_p).astype(jnp.bfloat16)

    # interior mask (zero the padding ring after reduce+bn+relu)
    rows = jnp.arange(Hp)[:, None]
    cols = jnp.arange(Wp)[None, :]
    mask = ((rows >= 1) & (rows <= H) & (cols >= 1) & (cols <= W))
    mask = mask.astype(jnp.float32).reshape(Hp * Wp, 1)

    y2 = reduce_split(xpad_flat, mask,
                      p["w_reduce"], p["s_reduce"], p["b_reduce"],
                      p["w_split_dense"], p["s_split"], p["b_split"],
                      Hp=Hp, Wp=Wp, H=H)               # (N, H*Wp, dp) bf16

    # drop garbage columns, apply stride (exact for k=3, p=1), flatten
    y2 = y2.reshape(N, H, Wp, dp)[:, ::stride, 0:W:stride, :]
    Ho, Wo = y2.shape[1], y2.shape[2]
    y2_flat = y2.reshape(N * Ho * Wo, dp)

    xs = x_p[:, ::stride, ::stride, :].astype(jnp.bfloat16)
    xs_flat = xs.reshape(N * Ho * Wo, cin_p)

    out = expand_plus_shortcut(
        y2_flat, p["w_expand"], p["s_expand"], p["b_expand"],
        xs_flat, p["w_short"], p["s_short"], p["b_short"])
    out = out[:, :cout].reshape(N, Ho, Wo, cout)
    return jnp.transpose(out, (0, 3, 1, 2))            # back to NCHW


# ----------------------------------------------------------------------------
# Parameter setup (deterministic synthetic weights, folded BN)
# ----------------------------------------------------------------------------
def bn_fold(key, c):
    k1, k2, k3, k4 = jax.random.split(key, 4)
    gamma = jax.random.uniform(k1, (c,), minval=0.5, maxval=1.5)
    beta = jax.random.normal(k2, (c,)) * 0.1
    mean = jax.random.normal(k3, (c,)) * 0.1
    var = jax.random.uniform(k4, (c,), minval=0.5, maxval=1.5)
    scale = gamma / jnp.sqrt(var + EPS)
    bias = beta - mean * scale
    return scale.astype(jnp.float32), bias.astype(jnp.float32)


def grouped_to_dense(w_groups, d_pad):
    # w_groups: (card, cg_out, cg_in, 3, 3)  (PyTorch-style grouped weight)
    card, cg, _, kh, kw = w_groups.shape
    dense = jnp.zeros((kh * kw, d_pad, d_pad), jnp.float32)
    for g in range(card):
        blk = jnp.transpose(w_groups[g], (2, 3, 1, 0))      # (kh, kw, cin_l, cout_l)
        blk = blk.reshape(kh * kw, cg, cg)
        dense = dense.at[:, g * cg:(g + 1) * cg, g * cg:(g + 1) * cg].set(blk)
    return dense


def make_kernel_params(raw, cin, D, cout):
    cin_p = _round_up(cin, LANE)
    dp = _round_up(D, LANE)
    cout_p = _round_up(cout, LANE)

    def padw(w, r, c):
        out = jnp.zeros((r, c), jnp.float32).at[:w.shape[0], :w.shape[1]].set(w)
        return out.astype(jnp.bfloat16)

    def padv(v, c):
        return jnp.zeros((1, c), jnp.float32).at[0, :v.shape[0]].set(v)

    return dict(
        w_reduce=padw(raw["w_reduce"], cin_p, dp),
        w_split_dense=grouped_to_dense(raw["w_groups"], dp).astype(jnp.bfloat16),
        w_expand=padw(raw["w_expand"], dp, cout_p),
        w_short=padw(raw["w_short"], cin_p, cout_p),
        s_reduce=padv(raw["s_reduce"], dp), b_reduce=padv(raw["b_reduce"], dp),
        s_split=padv(raw["s_split"], dp), b_split=padv(raw["b_split"], dp),
        s_expand=padv(raw["s_expand"], cout_p), b_expand=padv(raw["b_expand"], cout_p),
        s_short=padv(raw["s_short"], cout_p), b_short=padv(raw["b_short"], cout_p),
        cout=cout,
    )


# ----------------------------------------------------------------------------
# Pure-JAX reference (same bf16-input / f32-accumulate precision policy)
# ----------------------------------------------------------------------------
def ref_forward(x_nchw, raw, stride, cardinality):
    x = jnp.transpose(x_nchw, (0, 2, 3, 1)).astype(jnp.float32)
    bf = jnp.bfloat16

    def bn(y, s, b):
        return y * s.reshape(1, 1, 1, -1) + b.reshape(1, 1, 1, -1)

    y = jnp.einsum("nhwc,cd->nhwd", x.astype(bf), raw["w_reduce"].astype(bf),
                   preferred_element_type=jnp.float32)
    y = jax.nn.relu(bn(y, raw["s_reduce"], raw["b_reduce"]))

    wg = raw["w_groups"]
    card, cg, _, kh, kw = wg.shape
    w_hwio = jnp.transpose(wg, (3, 4, 2, 0, 1)).reshape(kh, kw, cg, card * cg)
    y = lax.conv_general_dilated(
        y.astype(bf), w_hwio.astype(bf), (stride, stride), ((1, 1), (1, 1)),
        dimension_numbers=("NHWC", "HWIO", "NHWC"),
        feature_group_count=cardinality,
        preferred_element_type=jnp.float32)
    y = jax.nn.relu(bn(y, raw["s_split"], raw["b_split"]))

    y = bn(jnp.einsum("nhwc,cd->nhwd", y.astype(bf), raw["w_expand"].astype(bf),
                      preferred_element_type=jnp.float32),
           raw["s_expand"], raw["b_expand"])
    xs = x[:, ::stride, ::stride, :]
    r = bn(jnp.einsum("nhwc,cd->nhwd", xs.astype(bf), raw["w_short"].astype(bf),
                      preferred_element_type=jnp.float32),
           raw["s_short"], raw["b_short"])
    return jnp.transpose(jax.nn.relu(y + r), (0, 3, 1, 2))


if __name__ == "__main__":
    # Module config (small, valid ResNeXt block):
    in_channels, out_channels = 64, 64
    stride = 1
    cardinality, base_width, widen_factor = 4, 8, 1
    width_ratio = out_channels / (widen_factor * 64.0)
    D = cardinality * int(base_width * width_ratio)      # = 32
    cg = D // cardinality

    N, H, W = 2, 8, 8
    key = jax.random.PRNGKey(0)
    keys = jax.random.split(key, 9)

    x = jax.random.normal(keys[0], (N, in_channels, H, W), jnp.float32)

    w_reduce = (jax.random.normal(keys[1], (in_channels, D)) * 0.1).astype(jnp.float32)
    w_groups = (jax.random.normal(keys[2], (cardinality, cg, cg, 3, 3)) * 0.1).astype(jnp.float32)
    w_expand = (jax.random.normal(keys[3], (D, out_channels)) * 0.1).astype(jnp.float32)
    w_short = (jax.random.normal(keys[4], (in_channels, out_channels)) * 0.1).astype(jnp.float32)

    s_reduce, b_reduce = bn_fold(keys[5], D)
    s_split, b_split = bn_fold(keys[6], D)
    s_expand, b_expand = bn_fold(keys[7], out_channels)
    s_short, b_short = bn_fold(keys[8], out_channels)

    raw = dict(w_reduce=w_reduce, w_groups=w_groups, w_expand=w_expand,
               w_short=w_short,
               s_reduce=s_reduce, b_reduce=b_reduce,
               s_split=s_split, b_split=b_split,
               s_expand=s_expand, b_expand=b_expand,
               s_short=s_short, b_short=b_short)

    params = make_kernel_params(raw, in_channels, D, out_channels)

    out = jax.block_until_ready(resnext_bottleneck_forward(x, params, stride))
    ref = jax.block_until_ready(ref_forward(x, raw, stride, cardinality))

    assert out.shape == ref.shape, (out.shape, ref.shape)
    err = float(jnp.max(jnp.abs(out - ref)))
    assert err < 2e-2, err
    print("KERNEL_OK")
</pallas_src>

<mosaic_0001>
module attributes {stable_mosaic.version = 11 : i64} {
  func.func @_reduce_split_kernel(%arg0: i32, %arg1: memref<1x110x128xbf16, #tpu.memory_space<vmem>>, %arg2: memref<110x1xf32, #tpu.memory_space<vmem>>, %arg3: memref<128x128xbf16, #tpu.memory_space<vmem>>, %arg4: memref<1x128xf32, #tpu.memory_space<vmem>>, %arg5: memref<1x128xf32, #tpu.memory_space<vmem>>, %arg6: memref<9x128x128xbf16, #tpu.memory_space<vmem>>, %arg7: memref<1x128xf32, #tpu.memory_space<vmem>>, %arg8: memref<1x128xf32, #tpu.memory_space<vmem>>, %arg9: memref<1x80x128xbf16, #tpu.memory_space<vmem>>) attributes {dimension_semantics = [#tpu.dimension_semantics<parallel>], iteration_bounds = array<i64: 2>, scalar_prefetch = 0 : i64, scratch_operands = 0 : i64, tpu.core_type = #tpu.core_type<tc>, window_params = [{transform_indices = @transform_0, window_bounds = array<i64: 1, 110, 128>}, {pipeline_mode = #tpu.pipeline_mode<synchronous>, transform_indices = @transform_1, window_bounds = array<i64: 110, 1>}, {pipeline_mode = #tpu.pipeline_mode<synchronous>, transform_indices = @transform_2, window_bounds = array<i64: 128, 128>}, {pipeline_mode = #tpu.pipeline_mode<synchronous>, transform_indices = @transform_3, window_bounds = array<i64: 1, 128>}, {pipeline_mode = #tpu.pipeline_mode<synchronous>, transform_indices = @transform_4, window_bounds = array<i64: 1, 128>}, {pipeline_mode = #tpu.pipeline_mode<synchronous>, transform_indices = @transform_5, window_bounds = array<i64: 9, 128, 128>}, {pipeline_mode = #tpu.pipeline_mode<synchronous>, transform_indices = @transform_6, window_bounds = array<i64: 1, 128>}, {pipeline_mode = #tpu.pipeline_mode<synchronous>, transform_indices = @transform_7, window_bounds = array<i64: 1, 128>}, {transform_indices = @transform_8, window_bounds = array<i64: 1, 80, 128>}]} {
    %c0 = arith.constant 0 : index
    %c0_0 = arith.constant 0 : index
    %c0_1 = arith.constant 0 : index
    %0 = vector.load %arg1[%c0, %c0_0, %c0_1] : memref<1x110x128xbf16, #tpu.memory_space<vmem>>, vector<1x110x128xbf16>
    %1 = vector.shape_cast %0 : vector<1x110x128xbf16> to vector<110x128xbf16>
    %c0_2 = arith.constant 0 : index
    %c0_3 = arith.constant 0 : index
    %2 = vector.load %arg3[%c0_2, %c0_3] : memref<128x128xbf16, #tpu.memory_space<vmem>>, vector<128x128xbf16>
    %cst = arith.constant dense<0.000000e+00> : vector<110x128xf32>
    %3 = tpu.matmul %1, %2, %cst {dimension_numbers = #tpu.dot_dimension_numbers<[1], [0], [0], [1], [0, 0, 1, 1], [], []>} : vector<110x128xbf16>, vector<128x128xbf16>, vector<110x128xf32> -> vector<110x128xf32>
    %c0_4 = arith.constant 0 : index
    %c0_5 = arith.constant 0 : index
    %4 = vector.load %arg4[%c0_4, %c0_5] : memref<1x128xf32, #tpu.memory_space<vmem>>, vector<1x128xf32>
    %5 = vector.broadcast %4 : vector<1x128xf32> to vector<110x128xf32>
    %6 = arith.mulf %3, %5 : vector<110x128xf32>
    %c0_6 = arith.constant 0 : index
    %c0_7 = arith.constant 0 : index
    %7 = vector.load %arg5[%c0_6, %c0_7] : memref<1x128xf32, #tpu.memory_space<vmem>>, vector<1x128xf32>
    %8 = vector.broadcast %7 : vector<1x128xf32> to vector<110x128xf32>
    %9 = arith.addf %6, %8 : vector<110x128xf32>
    %cst_8 = arith.constant 0.000000e+00 : f32
    %10 = vector.broadcast %cst_8 : f32 to vector<110x128xf32>
    %11 = arith.maximumf %9, %10 : vector<110x128xf32>
    %c0_9 = arith.constant 0 : index
    %c0_10 = arith.constant 0 : index
    %12 = vector.load %arg2[%c0_9, %c0_10] : memref<110x1xf32, #tpu.memory_space<vmem>>, vector<110x1xf32>
    %13 = vector.broadcast %12 : vector<110x1xf32> to vector<110x128xf32>
    %14 = arith.mulf %11, %13 : vector<110x128xf32>
    %15 = arith.truncf %14 : vector<110x128xf32> to vector<110x128xbf16>
    %cst_11 = arith.constant 0.000000e+00 : f32
    %16 = vector.broadcast %cst_11 : f32 to vector<80x128xf32>
    %17 = vector.extract_strided_slice %15 {offsets = [0, 0], sizes = [80, 128], strides = [1, 1]} : vector<110x128xbf16> to vector<80x128xbf16>
    %c0_12 = arith.constant 0 : index
    %c0_13 = arith.constant 0 : index
    %c0_14 = arith.constant 0 : index
    %18 = vector.load %arg6[%c0_12, %c0_13, %c0_14] : memref<9x128x128xbf16, #tpu.memory_space<vmem>>, vector<1x128x128xbf16>
    %19 = vector.shape_cast %18 : vector<1x128x128xbf16> to vector<128x128xbf16>
    %cst_15 = arith.constant dense<0.000000e+00> : vector<80x128xf32>
    %20 = tpu.matmul %17, %19, %cst_15 {dimension_numbers = #tpu.dot_dimension_numbers<[1], [0], [0], [1], [0, 0, 1, 1], [], []>} : vector<80x128xbf16>, vector<128x128xbf16>, vector<80x128xf32> -> vector<80x128xf32>
    %21 = arith.addf %16, %20 : vector<80x128xf32>
    %22 = vector.extract_strided_slice %15 {offsets = [1, 0], sizes = [80, 128], strides = [1, 1]} : vector<110x128xbf16> to vector<80x128xbf16>
    %c1 = arith.constant 1 : index
    %c0_16 = arith.constant 0 : index
    %c0_17 = arith.constant 0 : index
    %23 = vector.load %arg6[%c1, %c0_16, %c0_17] : memref<9x128x128xbf16, #tpu.memory_space<vmem>>, vector<1x128x128xbf16>
    %24 = vector.shape_cast %23 : vector<1x128x128xbf16> to vector<128x128xbf16>
    %cst_18 = arith.constant dense<0.000000e+00> : vector<80x128xf32>
    %25 = tpu.matmul %22, %24, %cst_18 {dimension_numbers = #tpu.dot_dimension_numbers<[1], [0], [0], [1], [0, 0, 1, 1], [], []>} : vector<80x128xbf16>, vector<128x128xbf16>, vector<80x128xf32> -> vector<80x128xf32>
    %26 = arith.addf %21, %25 : vector<80x128xf32>
    %27 = vector.extract_strided_slice %15 {offsets = [2, 0], sizes = [80, 128], strides = [1, 1]} : vector<110x128xbf16> to vector<80x128xbf16>
    %c2 = arith.constant 2 : index
    %c0_19 = arith.constant 0 : index
    %c0_20 = arith.constant 0 : index
    %28 = vector.load %arg6[%c2, %c0_19, %c0_20] : memref<9x128x128xbf16, #tpu.memory_space<vmem>>, vector<1x128x128xbf16>
    %29 = vector.shape_cast %28 : vector<1x128x128xbf16> to vector<128x128xbf16>
    %cst_21 = arith.constant dense<0.000000e+00> : vector<80x128xf32>
    %30 = tpu.matmul %27, %29, %cst_21 {dimension_numbers = #tpu.dot_dimension_numbers<[1], [0], [0], [1], [0, 0, 1, 1], [], []>} : vector<80x128xbf16>, vector<128x128xbf16>, vector<80x128xf32> -> vector<80x128xf32>
    %31 = arith.addf %26, %30 : vector<80x128xf32>
    %32 = vector.extract_strided_slice %15 {offsets = [10, 0], sizes = [80, 128], strides = [1, 1]} : vector<110x128xbf16> to vector<80x128xbf16>
    %c3 = arith.constant 3 : index
    %c0_22 = arith.constant 0 : index
    %c0_23 = arith.constant 0 : index
    %33 = vector.load %arg6[%c3, %c0_22, %c0_23] : memref<9x128x128xbf16, #tpu.memory_space<vmem>>, vector<1x128x128xbf16>
    %34 = vector.shape_cast %33 : vector<1x128x128xbf16> to vector<128x128xbf16>
    %cst_24 = arith.constant dense<0.000000e+00> : vector<80x128xf32>
    %35 = tpu.matmul %32, %34, %cst_24 {dimension_numbers = #tpu.dot_dimension_numbers<[1], [0], [0], [1], [0, 0, 1, 1], [], []>} : vector<80x128xbf16>, vector<128x128xbf16>, vector<80x128xf32> -> vector<80x128xf32>
    %36 = arith.addf %31, %35 : vector<80x128xf32>
    %37 = vector.extract_strided_slice %15 {offsets = [11, 0], sizes = [80, 128], strides = [1, 1]} : vector<110x128xbf16> to vector<80x128xbf16>
    %c4 = arith.constant 4 : index
    %c0_25 = arith.constant 0 : index
    %c0_26 = arith.constant 0 : index
    %38 = vector.load %arg6[%c4, %c0_25, %c0_26] : memref<9x128x128xbf16, #tpu.memory_space<vmem>>, vector<1x128x128xbf16>
    %39 = vector.shape_cast %38 : vector<1x128x128xbf16> to vector<128x128xbf16>
    %cst_27 = arith.constant dense<0.000000e+00> : vector<80x128xf32>
    %40 = tpu.matmul %37, %39, %cst_27 {dimension_numbers = #tpu.dot_dimension_numbers<[1], [0], [0], [1], [0, 0, 1, 1], [], []>} : vector<80x128xbf16>, vector<128x128xbf16>, vector<80x128xf32> -> vector<80x128xf32>
    %41 = arith.addf %36, %40 : vector<80x128xf32>
    %42 = vector.extract_strided_slice %15 {offsets = [12, 0], sizes = [80, 128], strides = [1, 1]} : vector<110x128xbf16> to vector<80x128xbf16>
    %c5 = arith.constant 5 : index
    %c0_28 = arith.constant 0 : index
    %c0_29 = arith.constant 0 : index
    %43 = vector.load %arg6[%c5, %c0_28, %c0_29] : memref<9x128x128xbf16, #tpu.memory_space<vmem>>, vector<1x128x128xbf16>
    %44 = vector.shape_cast %43 : vector<1x128x128xbf16> to vector<128x128xbf16>
    %cst_30 = arith.constant dense<0.000000e+00> : vector<80x128xf32>
    %45 = tpu.matmul %42, %44, %cst_30 {dimension_numbers = #tpu.dot_dimension_numbers<[1], [0], [0], [1], [0, 0, 1, 1], [], []>} : vector<80x128xbf16>, vector<128x128xbf16>, vector<80x128xf32> -> vector<80x128xf32>
    %46 = arith.addf %41, %45 : vector<80x128xf32>
    %47 = vector.extract_strided_slice %15 {offsets = [20, 0], sizes = [80, 128], strides = [1, 1]} : vector<110x128xbf16> to vector<80x128xbf16>
    %c6 = arith.constant 6 : index
    %c0_31 = arith.constant 0 : index
    %c0_32 = arith.constant 0 : index
    %48 = vector.load %arg6[%c6, %c0_31, %c0_32] : memref<9x128x128xbf16, #tpu.memory_space<vmem>>, vector<1x128x128xbf16>
    %49 = vector.shape_cast %48 : vector<1x128x128xbf16> to vector<128x128xbf16>
    %cst_33 = arith.constant dense<0.000000e+00> : vector<80x128xf32>
    %50 = tpu.matmul %47, %49, %cst_33 {dimension_numbers = #tpu.dot_dimension_numbers<[1], [0], [0], [1], [0, 0, 1, 1], [], []>} : vector<80x128xbf16>, vector<128x128xbf16>, vector<80x128xf32> -> vector<80x128xf32>
    %51 = arith.addf %46, %50 : vector<80x128xf32>
    %52 = vector.extract_strided_slice %15 {offsets = [21, 0], sizes = [80, 128], strides = [1, 1]} : vector<110x128xbf16> to vector<80x128xbf16>
    %c7 = arith.constant 7 : index
    %c0_34 = arith.constant 0 : index
    %c0_35 = arith.constant 0 : index
    %53 = vector.load %arg6[%c7, %c0_34, %c0_35] : memref<9x128x128xbf16, #tpu.memory_space<vmem>>, vector<1x128x128xbf16>
    %54 = vector.shape_cast %53 : vector<1x128x128xbf16> to vector<128x128xbf16>
    %cst_36 = arith.constant dense<0.000000e+00> : vector<80x128xf32>
    %55 = tpu.matmul %52, %54, %cst_36 {dimension_numbers = #tpu.dot_dimension_numbers<[1], [0], [0], [1], [0, 0, 1, 1], [], []>} : vector<80x128xbf16>, vector<128x128xbf16>, vector<80x128xf32> -> vector<80x128xf32>
    %56 = arith.addf %51, %55 : vector<80x128xf32>
    %57 = vector.extract_strided_slice %15 {offsets = [22, 0], sizes = [80, 128], strides = [1, 1]} : vector<110x128xbf16> to vector<80x128xbf16>
    %c8 = arith.constant 8 : index
    %c0_37 = arith.constant 0 : index
    %c0_38 = arith.constant 0 : index
    %58 = vector.load %arg6[%c8, %c0_37, %c0_38] : memref<9x128x128xbf16, #tpu.memory_space<vmem>>, vector<1x128x128xbf16>
    %59 = vector.shape_cast %58 : vector<1x128x128xbf16> to vector<128x128xbf16>
    %cst_39 = arith.constant dense<0.000000e+00> : vector<80x128xf32>
    %60 = tpu.matmul %57, %59, %cst_39 {dimension_numbers = #tpu.dot_dimension_numbers<[1], [0], [0], [1], [0, 0, 1, 1], [], []>} : vector<80x128xbf16>, vector<128x128xbf16>, vector<80x128xf32> -> vector<80x128xf32>
    %61 = arith.addf %56, %60 : vector<80x128xf32>
    %c0_40 = arith.constant 0 : index
    %c0_41 = arith.constant 0 : index
    %62 = vector.load %arg7[%c0_40, %c0_41] : memref<1x128xf32, #tpu.memory_space<vmem>>, vector<1x128xf32>
    %63 = vector.broadcast %62 : vector<1x128xf32> to vector<80x128xf32>
    %64 = arith.mulf %61, %63 : vector<80x128xf32>
    %c0_42 = arith.constant 0 : index
    %c0_43 = arith.constant 0 : index
    %65 = vector.load %arg8[%c0_42, %c0_43] : memref<1x128xf32, #tpu.memory_space<vmem>>, vector<1x128xf32>
    %66 = vector.broadcast %65 : vector<1x128xf32> to vector<80x128xf32>
    %67 = arith.addf %64, %66 : vector<80x128xf32>
    %cst_44 = arith.constant 0.000000e+00 : f32
    %68 = vector.broadcast %cst_44 : f32 to vector<80x128xf32>
    %69 = arith.maximumf %67, %68 : vector<80x128xf32>
    %70 = vector.shape_cast %69 : vector<80x128xf32> to vector<1x80x128xf32>
    %71 = arith.truncf %70 : vector<1x80x128xf32> to vector<1x80x128xbf16>
    %c0_45 = arith.constant 0 : index
    %c0_46 = arith.constant 0 : index
    %c0_47 = arith.constant 0 : index
    %72 = vector.load %arg9[%c0_45, %c0_46, %c0_47] : memref<1x80x128xbf16, #tpu.memory_space<vmem>>, vector<1x80x128xbf16>
    tpu.vector_store %arg9[%c0_45, %c0_46, %c0_47], %71 {strides = array<i32>} : memref<1x80x128xbf16, #tpu.memory_space<vmem>>, vector<1x80x128xbf16>,
    return
  }
  func.func @transform_0(%arg0: i32) -> (i32, i32, i32) {
    %c0_i32 = arith.constant 0 : i32
    %c0_i32_0 = arith.constant 0 : i32
    %c0_i32_1 = arith.constant 0 : i32
    return %arg0, %c0_i32, %c0_i32_0 : i32, i32, i32
  }
  func.func @transform_1(%arg0: i32) -> (i32, i32) {
    %c0_i32 = arith.constant 0 : i32
    %c0_i32_0 = arith.constant 0 : i32
    %c0_i32_1 = arith.constant 0 : i32
    return %c0_i32, %c0_i32_0 : i32, i32
  }
  func.func @transform_2(%arg0: i32) -> (i32, i32) {
    %c0_i32 = arith.constant 0 : i32
    %c0_i32_0 = arith.constant 0 : i32
    %c0_i32_1 = arith.constant 0 : i32
    return %c0_i32, %c0_i32_0 : i32, i32
  }
  func.func @transform_3(%arg0: i32) -> (i32, i32) {
    %c0_i32 = arith.constant 0 : i32
    %c0_i32_0 = arith.constant 0 : i32
    %c0_i32_1 = arith.constant 0 : i32
    return %c0_i32, %c0_i32_0 : i32, i32
  }
  func.func @transform_4(%arg0: i32) -> (i32, i32) {
    %c0_i32 = arith.constant 0 : i32
    %c0_i32_0 = arith.constant 0 : i32
    %c0_i32_1 = arith.constant 0 : i32
    return %c0_i32, %c0_i32_0 : i32, i32
  }
  func.func @transform_5(%arg0: i32) -> (i32, i32, i32) {
    %c0_i32 = arith.constant 0 : i32
    %c0_i32_0 = arith.constant 0 : i32
    %c0_i32_1 = arith.constant 0 : i32
    %c0_i32_2 = arith.constant 0 : i32
    return %c0_i32, %c0_i32_0, %c0_i32_1 : i32, i32, i32
  }
  func.func @transform_6(%arg0: i32) -> (i32, i32) {
    %c0_i32 = arith.constant 0 : i32
    %c0_i32_0 = arith.constant 0 : i32
    %c0_i32_1 = arith.constant 0 : i32
    return %c0_i32, %c0_i32_0 : i32, i32
  }
  func.func @transform_7(%arg0: i32) -> (i32, i32) {
    %c0_i32 = arith.constant 0 : i32
    %c0_i32_0 = arith.constant 0 : i32
    %c0_i32_1 = arith.constant 0 : i32
    return %c0_i32, %c0_i32_0 : i32, i32
  }
  func.func @transform_8(%arg0: i32) -> (i32, i32, i32) {
    %c0_i32 = arith.constant 0 : i32
    %c0_i32_0 = arith.constant 0 : i32
    %c0_i32_1 = arith.constant 0 : i32
    return %arg0, %c0_i32, %c0_i32_0 : i32, i32, i32
  }
}

</mosaic_0001>

<llo_original>
// kernel: tpu_custom_call.1
$region0: #{tpu_custom_call.1}
  #allocation0 [shape = 'u32[]', space=smem, size = 0x4, offset = 0x4, fixed_abs, tag = 'smem constant byte address 0x4 - core index']
  #allocation1 [shape = 'u32[144,128]{1,0:T(1,128)}', space=vmem, size = 0x12000, scoped, tag = 'internal scratch']
  %s0 = inlined_call_operand.vmem [shape: bf16[2,110,128], index: 0, kind: input, shape index: {}]
  %s1 = inlined_call_operand.vmem [shape: f32[110,1], index: 1, kind: input, shape index: {}]
  %s2 = inlined_call_operand.vmem [shape: bf16[128,128], index: 2, kind: input, shape index: {}]
  %s3 = inlined_call_operand.vmem [shape: f32[1,128], index: 3, kind: input, shape index: {}]
  %s4 = inlined_call_operand.vmem [shape: f32[1,128], index: 4, kind: input, shape index: {}]
  %s5 = inlined_call_operand.hbm [shape: bf16[9,128,128], index: 5, kind: input, shape index: {}]
  %s6 = inlined_call_operand.vmem [shape: f32[1,128], index: 6, kind: input, shape index: {}]
  %s7 = inlined_call_operand.vmem [shape: f32[1,128], index: 7, kind: input, shape index: {}]
  %s8 = inlined_call_operand.hbm [shape: bf16[2,80,128], index: 8, kind: output, shape index: {}]
  %s9 = sld [smem:[#allocation0]]
  $region69: #{tpu_custom_call.1} parent=0
    _
  %s11 = ssub.s32 1, %s9
  %s12 = scalar_select 0, %s11, %s9
  $region1: #{tpu_custom_call.1} parent=0
    #allocation2 [shape = 'u8[294912]{0}', space=vmem, size = 0x48000, scoped, tag = 'input window, operand 5, single buffered']
    #allocation3 [shape = 's32[2]{0}', space=sflag, size = 0x8, scoped, tag = 'scoped memory for tpu_custom_call.1']
    #allocation4 [shape = 's32[2]{0}', space=sflag, size = 0x8, scoped, tag = 'scoped memory for tpu_custom_call.1']
    #allocation5 [shape = 'u8[40960]{0}', space=vmem, size = 0xa000, scoped, tag = 'output window, operand 0']
    %13 = vsyncpa [#allocation3], 0
    %14 = vsyncpa [#allocation4], 0
    %s15 = scalar_lea.sflag [#allocation4], 1
    %16 = vsyncpa %s15, 0
    loop: start=0, step=1, limit=4
    $region2: #{tpu_custom_call.1} parent=1 // loop_pre_header
      _
    $region3: #{tpu_custom_call.1} parent=1 // loop_header
      %s18 = sphi 0, %s22
      %p19 = scmp.ge.s32.totalorder %s18, 4
      %s28 = sphi 0, %s30
      %s31 = sphi 0, %s28
      %s32 = sphi 0, %s31
      %s48 = sphi 0, %s32
      %s52 = sphi 0, %s52
      %s54 = sphi 0, %s52
      %s55 = sphi 0, %s54
      %s69 = sphi 0, %s55
      %s73 = sphi 0, %s73
      %s75 = sphi 0, %s73
      %s76 = sphi 0, %s75
      %s90 = sphi 0, %s76
      %s94 = sphi 0, %s94
      %s96 = sphi 0, %s94
      %s97 = sphi 0, %s96
      %s111 = sphi 0, %s97
      %s115 = sphi 0, %s115
      %s117 = sphi 0, %s115
      %s118 = sphi 0, %s117
      %s132 = sphi 0, %s118
      %s136 = sphi 0, %s136
      %s138 = sphi 0, %s136
      %s139 = sphi 0, %s138
      %s153 = sphi 0, %s139
      %s157 = sphi 0, %s157
      %s159 = sphi 0, %s157
      %s160 = sphi 0, %s159
      %s174 = sphi 0, %s160
      %s178 = sphi 0, %s178
      %s180 = sphi 0, %s178
      %s181 = sphi 0, %s180
      %s195 = sphi 0, %s181
      %s201 = sphi 0, %s203
      %s204 = sphi 0, %s201
      %s205 = sphi 0, %s204
      %s221 = sphi 0, %s205
    $region4: #{tpu_custom_call.1} parent=1 // loop_header_branch
      %21 = sbr.rel (%p19) target = $region8
    $region5: #{tpu_custom_call.1} parent=1 // loop_body
      %s23 = ssub.s32 %s18, 1
      %s24 = ssub.s32 %s18, 2
      %s25 = sadd.s32 %s18, 1
      %s26 = ssub.s32 %s18, %s25
      %p27 = scmp.eq.s32.totalorder %s26, 0
      %s29 = sadd.s32 %s28, 1
      %s30 = scalar_select %p27, %s28, %s29
      %p33 = pneg %p27
      %p34 = scmp.eq.s32.totalorder %s18, 1
      %p35 = por %p33, %p34
      %p36 = scmp.ne.s32.totalorder %s28, %s31
      %p37 = scmp.eq.s32.totalorder %s18, 0
      %p38 = por %p36, %p37
      %p39 = scmp.ne.s32.totalorder %s28, %s31
      %p40 = scmp.eq.s32.totalorder %s23, 1
      %p41 = por %p39, %p40
      %p42 = scmp.ne.s32.totalorder %s31, %s32
      %p43 = scmp.eq.s32.totalorder %s23, 0
      %p44 = por %p42, %p43
      %p45 = scmp.ne.s32.totalorder %s31, %s32
      %p46 = scmp.eq.s32.totalorder %s24, 1
      %p47 = por %p45, %p46
      %p49 = scmp.ne.s32.totalorder %s32, %s48
      %p50 = scmp.eq.s32.totalorder %s24, 0
      %p51 = por %p49, %p50
      %s53 = sadd.s32 %s52, 1
      %p56 = scmp.eq.s32.totalorder %s18, 1
      %p57 = scmp.ne.s32.totalorder %s52, %s54
      %p58 = scmp.eq.s32.totalorder %s18, 0
      %p59 = por %p57, %p58
      %p60 = scmp.ne.s32.totalorder %s52, %s54
      %p61 = scmp.eq.s32.totalorder %s23, 1
      %p62 = por %p60, %p61
      %p63 = scmp.ne.s32.totalorder %s54, %s55
      %p64 = scmp.eq.s32.totalorder %s23, 0
      %p65 = por %p63, %p64
      %p66 = scmp.ne.s32.totalorder %s54, %s55
      %p67 = scmp.eq.s32.totalorder %s24, 1
      %p68 = por %p66, %p67
      %p70 = scmp.ne.s32.totalorder %s55, %s69
      %p71 = scmp.eq.s32.totalorder %s24, 0
      %p72 = por %p70, %p71
      %s74 = sadd.s32 %s73, 1
      %p77 = scmp.eq.s32.totalorder %s18, 1
      %p78 = scmp.ne.s32.totalorder %s73, %s75
      %p79 = scmp.eq.s32.totalorder %s18, 0
      %p80 = por %p78, %p79
      %p81 = scmp.ne.s32.totalorder %s73, %s75
      %p82 = scmp.eq.s32.totalorder %s23, 1
      %p83 = por %p81, %p82
      %p84 = scmp.ne.s32.totalorder %s75, %s76
      %p85 = scmp.eq.s32.totalorder %s23, 0
      %p86 = por %p84, %p85
      %p87 = scmp.ne.s32.totalorder %s75, %s76
      %p88 = scmp.eq.s32.totalorder %s24, 1
      %p89 = por %p87, %p88
      %p91 = scmp.ne.s32.totalorder %s76, %s90
      %p92 = scmp.eq.s32.totalorder %s24, 0
      %p93 = por %p91, %p92
      %s95 = sadd.s32 %s94, 1
      %p98 = scmp.eq.s32.totalorder %s18, 1
      %p99 = scmp.ne.s32.totalorder %s94, %s96
      %p100 = scmp.eq.s32.totalorder %s18, 0
      %p101 = por %p99, %p100
      %p102 = scmp.ne.s32.totalorder %s94, %s96
      %p103 = scmp.eq.s32.totalorder %s23, 1
      %p104 = por %p102, %p103
      %p105 = scmp.ne.s32.totalorder %s96, %s97
      %p106 = scmp.eq.s32.totalorder %s23, 0
      %p107 = por %p105, %p106
      %p108 = scmp.ne.s32.totalorder %s96, %s97
      %p109 = scmp.eq.s32.totalorder %s24, 1
      %p110 = por %p108, %p109
      %p112 = scmp.ne.s32.totalorder %s97, %s111
      %p113 = scmp.eq.s32.totalorder %s24, 0
      %p114 = por %p112, %p113
      %s116 = sadd.s32 %s115, 1
      %p119 = scmp.eq.s32.totalorder %s18, 1
      %p120 = scmp.ne.s32.totalorder %s115, %s117
      %p121 = scmp.eq.s32.totalorder %s18, 0
      %p122 = por %p120, %p121
      %p123 = scmp.ne.s32.totalorder %s115, %s117
      %p124 = scmp.eq.s32.totalorder %s23, 1
      %p125 = por %p123, %p124
      %p126 = scmp.ne.s32.totalorder %s117, %s118
      %p127 = scmp.eq.s32.totalorder %s23, 0
      %p128 = por %p126, %p127
      %p129 = scmp.ne.s32.totalorder %s117, %s118
      %p130 = scmp.eq.s32.totalorder %s24, 1
      %p131 = por %p129, %p130
      %p133 = scmp.ne.s32.totalorder %s118, %s132
      %p134 = scmp.eq.s32.totalorder %s24, 0
      %p135 = por %p133, %p134
      %s137 = sadd.s32 %s136, 1
      %p140 = scmp.eq.s32.totalorder %s18, 1
      %p141 = scmp.ne.s32.totalorder %s136, %s138
      %p142 = scmp.eq.s32.totalorder %s18, 0
      %p143 = por %p141, %p142
      %p144 = scmp.ne.s32.totalorder %s136, %s138
      %p145 = scmp.eq.s32.totalorder %s23, 1
      %p146 = por %p144, %p145
      %p147 = scmp.ne.s32.totalorder %s138, %s139
      %p148 = scmp.eq.s32.totalorder %s23, 0
      %p149 = por %p147, %p148
      %p150 = scmp.ne.s32.totalorder %s138, %s139
      %p151 = scmp.eq.s32.totalorder %s24, 1
      %p152 = por %p150, %p151
      %p154 = scmp.ne.s32.totalorder %s139, %s153
      %p155 = scmp.eq.s32.totalorder %s24, 0
      %p156 = por %p154, %p155
      %s158 = sadd.s32 %s157, 1
      %p161 = scmp.eq.s32.totalorder %s18, 1
      %p162 = scmp.ne.s32.totalorder %s157, %s159
      %p163 = scmp.eq.s32.totalorder %s18, 0
      %p164 = por %p162, %p163
      %p165 = scmp.ne.s32.totalorder %s157, %s159
      %p166 = scmp.eq.s32.totalorder %s23, 1
      %p167 = por %p165, %p166
      %p168 = scmp.ne.s32.totalorder %s159, %s160
      %p169 = scmp.eq.s32.totalorder %s23, 0
      %p170 = por %p168, %p169
      %p171 = scmp.ne.s32.totalorder %s159, %s160
      %p172 = scmp.eq.s32.totalorder %s24, 1
      %p173 = por %p171, %p172
      %p175 = scmp.ne.s32.totalorder %s160, %s174
      %p176 = scmp.eq.s32.totalorder %s24, 0
      %p177 = por %p175, %p176
      %s179 = sadd.s32 %s178, 1
      %p182 = scmp.eq.s32.totalorder %s18, 1
      %p183 = scmp.ne.s32.totalorder %s178, %s180
      %p184 = scmp.eq.s32.totalorder %s18, 0
      %p185 = por %p183, %p184
      %p186 = scmp.ne.s32.totalorder %s178, %s180
      %p187 = scmp.eq.s32.totalorder %s23, 1
      %p188 = por %p186, %p187
      %p189 = scmp.ne.s32.totalorder %s180, %s181
      %p190 = scmp.eq.s32.totalorder %s23, 0
      %p191 = por %p189, %p190
      %p192 = scmp.ne.s32.totalorder %s180, %s181
      %p193 = scmp.eq.s32.totalorder %s24, 1
      %p194 = por %p192, %p193
      %p196 = scmp.ne.s32.totalorder %s181, %s195
      %p197 = scmp.eq.s32.totalorder %s24, 0
      %p198 = por %p196, %p197
      %s199 = ssub.s32 %s18, %s25
      %p200 = scmp.eq.s32.totalorder %s199, 0
      %s202 = sadd.s32 %s201, 1
      %s203 = scalar_select %p200, %s201, %s202
      %p206 = pneg %p200
      %p207 = scmp.eq.s32.totalorder %s18, 1
      %p208 = por %p206, %p207
      %p209 = scmp.ne.s32.totalorder %s201, %s204
      %p210 = scmp.eq.s32.totalorder %s18, 0
      %p211 = por %p209, %p210
      %p212 = scmp.ne.s32.totalorder %s201, %s204
      %p213 = scmp.eq.s32.totalorder %s23, 1
      %p214 = por %p212, %p213
      %p215 = scmp.ne.s32.totalorder %s204, %s205
      %p216 = scmp.eq.s32.totalorder %s23, 0
      %p217 = por %p215, %p216
      %p218 = scmp.ne.s32.totalorder %s204, %s205
      %p219 = scmp.eq.s32.totalorder %s24, 1
      %p220 = por %p218, %p219
      %p222 = scmp.ne.s32.totalorder %s205, %s221
      %p223 = scmp.eq.s32.totalorder %s24, 0
      %p224 = por %p222, %p223
      %p225 = scmp.le.s32.totalorder 1, %s18
      %p226 = scmp.lt.s32.totalorder %s18, 3
      %p227 = pnand %p225, %p226
      %p228 = pneg %p227
      // Predicated region
      $region9: #{tpu_custom_call.1} parent=5 // pred_check
        _
      $region10: #{tpu_custom_call.1} parent=5 // pred_check_branch
        %230 = sbr.rel (%p227) target = $region12
      $region11: #{tpu_custom_call.1} parent=5 // pred_region
        %s231 = ssub.s32 %s18, 1
        // Predicated region
        $region13: #{tpu_custom_call.1} parent=11 // pred_check
          %p232 = pneg %p65
        $region14: #{tpu_custom_call.1} parent=11 // pred_check_branch
          %234 = sbr.rel (%p232) target = $region16
        $region15: #{tpu_custom_call.1} parent=11 // pred_region
          _
        $region16: #{tpu_custom_call.1} parent=11 // pred_fallthru
          _
        // Predicated region
        $region17: #{tpu_custom_call.1} parent=11 // pred_check
          %p235 = pneg %p86
        $region18: #{tpu_custom_call.1} parent=11 // pred_check_branch
          %237 = sbr.rel (%p235) target = $region20
        $region19: #{tpu_custom_call.1} parent=11 // pred_region
          _
        $region20: #{tpu_custom_call.1} parent=11 // pred_fallthru
          _
        // Predicated region
        $region21: #{tpu_custom_call.1} parent=11 // pred_check
          %p238 = pneg %p107
        $region22: #{tpu_custom_call.1} parent=11 // pred_check_branch
          %240 = sbr.rel (%p238) target = $region24
        $region23: #{tpu_custom_call.1} parent=11 // pred_region
          _
        $region24: #{tpu_custom_call.1} parent=11 // pred_fallthru
          _
        // Predicated region
        $region25: #{tpu_custom_call.1} parent=11 // pred_check
          %p241 = pneg %p128
        $region26: #{tpu_custom_call.1} parent=11 // pred_check_branch
          %243 = sbr.rel (%p241) target = $region28
        $region27: #{tpu_custom_call.1} parent=11 // pred_region
          _
        $region28: #{tpu_custom_call.1} parent=11 // pred_fallthru
          _
        // Predicated region
        $region29: #{tpu_custom_call.1} parent=11 // pred_check
          %p244 = pneg %p149
        $region30: #{tpu_custom_call.1} parent=11 // pred_check_branch
          %246 = sbr.rel (%p244) target = $region32
        $region31: #{tpu_custom_call.1} parent=11 // pred_region
          %s248 = ssub.s32 9216, 9216
          %249 = vsyncadd [#allocation3], %s248
          %s250 = sshll.u32 [#allocation2], 4
          %s251 = int_to_ptr.vmem [resolvable:$true] %s250
          %256 = dma.hbm_to_vmem [thread:$0]  %s5, 9216, %s251, [#allocation3], 64, 64, 4
        $region32: #{tpu_custom_call.1} parent=11 // pred_fallthru
          _
        // Predicated region
        $region33: #{tpu_custom_call.1} parent=11 // pred_check
          %p257 = pneg %p170
        $region34: #{tpu_custom_call.1} parent=11 // pred_check_branch
          %259 = sbr.rel (%p257) target = $region36
        $region35: #{tpu_custom_call.1} parent=11 // pred_region
          _
        $region36: #{tpu_custom_call.1} parent=11 // pred_fallthru
          _
        // Predicated region
        $region37: #{tpu_custom_call.1} parent=11 // pred_check
          %p260 = pneg %p191
        $region38: #{tpu_custom_call.1} parent=11 // pred_check_branch
          %262 = sbr.rel (%p260) target = $region40
        $region39: #{tpu_custom_call.1} parent=11 // pred_region
          _
        $region40: #{tpu_custom_call.1} parent=11 // pred_fallthru
          _
      $region12: #{tpu_custom_call.1} parent=5 // pred_fallthru
        _
      %p263 = scmp.lt.s32.totalorder %s18, 2
      // Predicated region
      $region41: #{tpu_custom_call.1} parent=5 // pred_check
        %p264 = pneg %p263
      $region42: #{tpu_custom_call.1} parent=5 // pred_check_branch
        %266 = sbr.rel (%p264) target = $region44
      $region43: #{tpu_custom_call.1} parent=5 // pred_region
        // Predicated region
        $region45: #{tpu_custom_call.1} parent=43 // pred_check
          %p267 = pneg %p38
        $region46: #{tpu_custom_call.1} parent=43 // pred_check_branch
          %269 = sbr.rel (%p267) target = $region48
        $region47: #{tpu_custom_call.1} parent=43 // pred_region
          %p270 = scmp.lt.s32.totalorder %s18, 1
          %s271 = scalar_select %p270, %s18, 1
          %s272 = smul.addr %s271, 14
          %s273 = smul.addr %s272, 4
          %s274 = scalar_lea.vmem %s0, %s273
        $region48: #{tpu_custom_call.1} parent=43 // pred_fallthru
          _
      $region44: #{tpu_custom_call.1} parent=5 // pred_fallthru
        _
      %p275 = scmp.le.s32.totalorder 1, %s18
      %p276 = scmp.lt.s32.totalorder %s18, 3
      %p277 = pnand %p275, %p276
      %p278 = pneg %p277
      // Predicated region
      $region49: #{tpu_custom_call.1} parent=5 // pred_check
        _
      $region50: #{tpu_custom_call.1} parent=5 // pred_check_branch
        %280 = sbr.rel (%p277) target = $region52
      $region51: #{tpu_custom_call.1} parent=5 // pred_region
        %s281 = ssub.s32 %s18, 1
        // Predicated region
        $region53: #{tpu_custom_call.1} parent=51 // pred_check
          %p282 = pneg %p149
        $region54: #{tpu_custom_call.1} parent=51 // pred_check_branch
          %284 = sbr.rel (%p282) target = $region56
        $region55: #{tpu_custom_call.1} parent=51 // pred_region
          %285 = dma.done [#allocation3], 9216
        $region56: #{tpu_custom_call.1} parent=51 // pred_fallthru
          _
        %p286 = scmp.lt.s32.totalorder %s23, 1
        %s287 = scalar_select %p286, %s23, 1
        %s288 = smul.addr %s287, 14
        %s289 = smul.addr %s288, 4
        %s290 = scalar_lea.vmem %s0, %s289
        %p291 = pneg %p44
        %p292 = pneg %p41
        %p293 = pneg %p65
        %p294 = pneg %p62
        %p295 = pneg %p86
        %p296 = pneg %p83
        %p297 = pneg %p107
        %p298 = pneg %p104
        %p299 = pneg %p128
        %p300 = pneg %p125
        %p301 = pneg %p149
        %p302 = pneg %p146
        %p303 = pneg %p170
        %p304 = pneg %p167
        %p305 = pneg %p191
        %p306 = pneg %p188
        %p307 = pneg %p217
        %p308 = pneg %p214
        %s309 = sand.u32 %s204, 1
        %s310 = scalar_lea.sflag [#allocation4], %s309
        %s311 = sand.u32 %s204, 1
        %s312 = smul.addr %s311, 40
        %s313 = scalar_lea.vmem [#allocation5], %s312
        %p314 = scmp.lt.s32.totalorder %s23, 1
        %s315 = scalar_select %p314, %s23, 1
        %s316 = smul.addr %s315, 14
        %s317 = smul.addr %s316, 4
        %s318 = scalar_lea.vmem %s0, %s317
        %v320 = vld [vmem:[%s318] sm:$0xf]
        %v321 = vld [vmem:[%s318 + $0x4] sm:$0xf]
        %v322 = vld [vmem:[%s318 + $0x8] sm:$0xf]
        %v323 = vld [vmem:[%s318 + $0xc] sm:$0xf]
        %v324 = vld [vmem:[%s318 + $0x10] sm:$0xf]
        %v325 = vld [vmem:[%s318 + $0x14] sm:$0xf]
        %v326 = vld [vmem:[%s318 + $0x18] sm:$0xf]
        %v327 = vld [vmem:[%s318 + $0x1c] sm:$0xf]
        %v328 = vld [vmem:[%s318 + $0x20] sm:$0xf]
        %v329 = vld [vmem:[%s318 + $0x24] sm:$0xf]
        %v330 = vld [vmem:[%s318 + $0x28] sm:$0xf]
        %v331 = vld [vmem:[%s318 + $0x2c] sm:$0xf]
        %v332 = vld [vmem:[%s318 + $0x30] sm:$0xf]
        %v333 = vld [vmem:[%s318 + $0x34] sm:$0x7]
        %v334 = vld [vmem:[%s2] sm:$0xf]
        %v335 = vld [vmem:[%s2 + $0x4] sm:$0xf]
        %v336 = vld [vmem:[%s2 + $0x8] sm:$0xf]
        %v337 = vld [vmem:[%s2 + $0xc] sm:$0xf]
        %v338 = vld [vmem:[%s2 + $0x10] sm:$0xf]
        %v339 = vld [vmem:[%s2 + $0x14] sm:$0xf]
        %v340 = vld [vmem:[%s2 + $0x18] sm:$0xf]
        %v341 = vld [vmem:[%s2 + $0x1c] sm:$0xf]
        %v342 = vld [vmem:[%s2 + $0x20] sm:$0xf]
        %v343 = vld [vmem:[%s2 + $0x24] sm:$0xf]
        %v344 = vld [vmem:[%s2 + $0x28] sm:$0xf]
        %v345 = vld [vmem:[%s2 + $0x2c] sm:$0xf]
        %v346 = vld [vmem:[%s2 + $0x30] sm:$0xf]
        %v347 = vld [vmem:[%s2 + $0x34] sm:$0xf]
        %v348 = vld [vmem:[%s2 + $0x38] sm:$0xf]
        %v349 = vld [vmem:[%s2 + $0x3c] sm:$0xf]
        %v364 = vunpack.c.l.b16 %v320
        %v365 = vunpack.c.l.b16 %v321
        %v366 = vunpack.c.l.b16 %v322
        %v367 = vunpack.c.l.b16 %v323
        %v368 = vunpack.c.l.b16 %v324
        %v369 = vunpack.c.l.b16 %v325
        %v370 = vunpack.c.l.b16 %v326
        %v371 = vunpack.c.l.b16 %v327
        %v372 = vunpack.c.l.b16 %v328
        %v373 = vunpack.c.l.b16 %v329
        %v374 = vunpack.c.l.b16 %v330
        %v375 = vunpack.c.l.b16 %v331
        %v376 = vunpack.c.l.b16 %v332
        %v377 = vunpack.c.l.b16 %v333
        %v378 = vpack.c.b16 %v365, %v364
        %v379 = vpack.c.b16 %v367, %v366
        %v380 = vpack.c.b16 %v369, %v368
        %v381 = vpack.c.b16 %v371, %v370
        %v382 = vpack.c.b16 %v373, %v372
        %v383 = vpack.c.b16 %v375, %v374
        %v384 = vpack.c.b16 %v377, %v376
        %v408 = vunpack.c.l.b16 %v334
        %v409 = vunpack.c.l.b16 %v335
        %v410 = vunpack.c.l.b16 %v336
        %v411 = vunpack.c.l.b16 %v337
        %v412 = vunpack.c.l.b16 %v338
        %v413 = vunpack.c.l.b16 %v339
        %v414 = vunpack.c.l.b16 %v340
        %v415 = vunpack.c.l.b16 %v341
        %v416 = vunpack.c.l.b16 %v342
        %v417 = vunpack.c.l.b16 %v343
        %v418 = vunpack.c.l.b16 %v344
        %v419 = vunpack.c.l.b16 %v345
        %v420 = vunpack.c.l.b16 %v346
        %v421 = vunpack.c.l.b16 %v347
        %v422 = vunpack.c.l.b16 %v348
        %v423 = vunpack.c.l.b16 %v349
        %v424 = vpack.c.b16 %v409, %v408
        %v425 = vpack.c.b16 %v411, %v410
        %v426 = vpack.c.b16 %v413, %v412
        %v427 = vpack.c.b16 %v415, %v414
        %v428 = vpack.c.b16 %v417, %v416
        %v429 = vpack.c.b16 %v419, %v418
        %v430 = vpack.c.b16 %v421, %v420
        %v431 = vpack.c.b16 %v423, %v422
        %440 = vmatprep.subr.bf16.mxu0 0
        %441 = vmatpush1.bf16.msra.mxu0 %v424
        %442 = vmatprep.subr.bf16.mxu0 0
        %443 = vmatpush1.bf16.msra.mxu0 %v425
        %444 = vmatprep.subr.bf16.mxu0 0
        %445 = vmatpush1.bf16.msra.mxu0 %v426
        %446 = vmatprep.subr.bf16.mxu0 0
        %447 = vmatpush1.bf16.msra.mxu0 %v427
        %448 = vmatprep.subr.bf16.mxu0 0
        %449 = vmatpush1.bf16.msra.mxu0 %v428
        %450 = vmatprep.subr.bf16.mxu0 0
        %451 = vmatpush1.bf16.msra.mxu0 %v429
        %452 = vmatprep.subr.bf16.mxu0 0
        %453 = vmatpush1.bf16.msra.mxu0 %v430
        %454 = vmatprep.subr.bf16.mxu0 0
        %455 = vmatpush1.bf16.msra.mxu0 %v431
        %456 = vmatprep.subr.bf16.mxu0 0
        %457 = vmatpush1.bf16.msra.mxu0 0
        %458 = vmatprep.subr.bf16.mxu0 0
        %459 = vmatpush1.bf16.msra.mxu0 0
        %460 = vmatprep.subr.bf16.mxu0 0
        %461 = vmatpush1.bf16.msra.mxu0 0
        %462 = vmatprep.subr.bf16.mxu0 0
        %463 = vmatpush1.bf16.msra.mxu0 0
        %464 = vmatprep.subr.bf16.mxu0 0
        %465 = vmatpush1.bf16.msra.mxu0 0
        %466 = vmatprep.subr.bf16.mxu0 0
        %467 = vmatpush1.bf16.msra.mxu0 0
        %468 = vmatprep.subr.bf16.mxu0 0
        %469 = vmatpush1.bf16.msra.mxu0 0
        %470 = vmatprep.subr.bf16.mxu0 0
        %471 = vmatpush1.bf16.msra.mxu0 0
        %472 = vmatprep.mubr.bf16.mxu0 0
        %473 = vmatmul.mubr.bf16.gmra.mrb[0].mxu0 %v378
        %v474 = vpop.f32.mrb[0].mxu0
        %v475 = vadd.f32 0.0, %v474
        %v476 = vpop.f32.mrb[0].mxu0
        %v477 = vpop.f32.mrb[0].mxu0
        %v478 = vadd.f32 0.0, %v477
        %v479 = vpop.f32.mrb[0].mxu0
        %480 = vmatprep.mubr.bf16.mxu0 0
        %481 = vmatmul.mubr.bf16.gmra.mrb[0].mxu0 %v379
        %v482 = vpop.f32.mrb[0].mxu0
        %v483 = vadd.f32 0.0, %v482
        %v484 = vpop.f32.mrb[0].mxu0
        %v485 = vpop.f32.mrb[0].mxu0
        %v486 = vadd.f32 0.0, %v485
        %v487 = vpop.f32.mrb[0].mxu0
        %488 = vmatprep.mubr.bf16.mxu0 0
        %489 = vmatmul.mubr.bf16.gmra.mrb[0].mxu0 %v380
        %v490 = vpop.f32.mrb[0].mxu0
        %v491 = vadd.f32 0.0, %v490
        %v492 = vpop.f32.mrb[0].mxu0
        %v493 = vpop.f32.mrb[0].mxu0
        %v494 = vadd.f32 0.0, %v493
        %v495 = vpop.f32.mrb[0].mxu0
        %496 = vmatprep.mubr.bf16.mxu0 0
        %497 = vmatmul.mubr.bf16.gmra.mrb[0].mxu0 %v381
        %v498 = vpop.f32.mrb[0].mxu0
        %v499 = vadd.f32 0.0, %v498
        %v500 = vpop.f32.mrb[0].mxu0
        %v501 = vpop.f32.mrb[0].mxu0
        %v502 = vadd.f32 0.0, %v501
        %v503 = vpop.f32.mrb[0].mxu0
        %504 = vmatprep.mubr.bf16.mxu0 0
        %505 = vmatmul.mubr.bf16.gmra.mrb[0].mxu0 %v382
        %v506 = vpop.f32.mrb[0].mxu0
        %v507 = vadd.f32 0.0, %v506
        %v508 = vpop.f32.mrb[0].mxu0
        %v509 = vpop.f32.mrb[0].mxu0
        %v510 = vadd.f32 0.0, %v509
        %v511 = vpop.f32.mrb[0].mxu0
        %512 = vmatprep.mubr.bf16.mxu0 0
        %513 = vmatmul.mubr.bf16.gmra.mrb[0].mxu0 %v383
        %v514 = vpop.f32.mrb[0].mxu0
        %v515 = vadd.f32 0.0, %v514
        %v516 = vpop.f32.mrb[0].mxu0
        %v517 = vpop.f32.mrb[0].mxu0
        %v518 = vadd.f32 0.0, %v517
        %v519 = vpop.f32.mrb[0].mxu0
        %520 = vmatprep.mubr.bf16.mxu0 0
        %521 = vmatmul.mubr.bf16.gmra.mrb[0].mxu0 %v384
        %v522 = vpop.f32.mrb[0].mxu0
        %v523 = vadd.f32 0.0, %v522
        %v524 = vpop.f32.mrb[0].mxu0
        %v525 = vpop.f32.mrb[0].mxu0
        %v526 = vadd.f32 0.0, %v525
        %v527 = vpop.f32.mrb[0].mxu0
        %528 = vdwg.mxu0
        %v529 = vld [vmem:[%s3] sm:$0x1]
        %v531 = vlaneseq
        %v532 = vshrl.u32 %v531, 7
        %v533 = vsub.s32 0, %v532
        %v534 = vrot.slane %v529, %v533
        %v536 = vmul.f32 %v475, %v534
        %v537 = vmul.f32 %v478, %v534
        %v538 = vmul.f32 %v483, %v534
        %v539 = vmul.f32 %v486, %v534
        %v540 = vmul.f32 %v491, %v534
        %v541 = vmul.f32 %v494, %v534
        %v542 = vmul.f32 %v499, %v534
        %v543 = vmul.f32 %v502, %v534
        %v544 = vmul.f32 %v507, %v534
        %v545 = vmul.f32 %v510, %v534
        %v546 = vmul.f32 %v515, %v534
        %v547 = vmul.f32 %v518, %v534
        %v548 = vmul.f32 %v523, %v534
        %v549 = vmul.f32 %v526, %v534
        %v550 = vld [vmem:[%s4] sm:$0x1]
        %v552 = vlaneseq
        %v553 = vshrl.u32 %v552, 7
        %v554 = vsub.s32 0, %v553
        %v555 = vrot.slane %v550, %v554
        %v557 = vadd.f32 %v536, %v555
        %v558 = vadd.f32 %v537, %v555
        %v559 = vadd.f32 %v538, %v555
        %v560 = vadd.f32 %v539, %v555
        %v561 = vadd.f32 %v540, %v555
        %v562 = vadd.f32 %v541, %v555
        %v563 = vadd.f32 %v542, %v555
        %v564 = vadd.f32 %v543, %v555
        %v565 = vadd.f32 %v544, %v555
        %v566 = vadd.f32 %v545, %v555
        %v567 = vadd.f32 %v546, %v555
        %v568 = vadd.f32 %v547, %v555
        %v569 = vadd.f32 %v548, %v555
        %v570 = vadd.f32 %v549, %v555
        %v571 = vmax.f32 %v557, 0.0
        %v572 = vmax.f32 %v558, 0.0
        %v573 = vmax.f32 %v559, 0.0
        %v574 = vmax.f32 %v560, 0.0
        %v575 = vmax.f32 %v561, 0.0
        %v576 = vmax.f32 %v562, 0.0
        %v577 = vmax.f32 %v563, 0.0
        %v578 = vmax.f32 %v564, 0.0
        %v579 = vmax.f32 %v565, 0.0
        %v580 = vmax.f32 %v566, 0.0
        %v581 = vmax.f32 %v567, 0.0
        %v582 = vmax.f32 %v568, 0.0
        %v583 = vmax.f32 %v569, 0.0
        %v584 = vmax.f32 %v570, 0.0
        %v585 = vld [vmem:[%s1] sm:$0xff]
        %v586 = vld [vmem:[%s1 + $0x8] sm:$0xff]
        %v587 = vld [vmem:[%s1 + $0x10] sm:$0xff]
        %v588 = vld [vmem:[%s1 + $0x18] sm:$0xff]
        %v589 = vld [vmem:[%s1 + $0x20] sm:$0xff]
        %v590 = vld [vmem:[%s1 + $0x28] sm:$0xff]
        %v591 = vld [vmem:[%s1 + $0x30] sm:$0xff]
        %v592 = vld [vmem:[%s1 + $0x38] sm:$0xff]
        %v593 = vld [vmem:[%s1 + $0x40] sm:$0xff]
        %v594 = vld [vmem:[%s1 + $0x48] sm:$0xff]
        %v595 = vld [vmem:[%s1 + $0x50] sm:$0xff]
        %v596 = vld [vmem:[%s1 + $0x58] sm:$0xff]
        %v597 = vld [vmem:[%s1 + $0x60] sm:$0xff]
        %v598 = vld [vmem:[%s1 + $0x68] sm:$0x3f]
        %600 = vset.pattern.permute.xlu0 0
        %601 = vperm.xlu0 %600, %v585
        %v602 = vpop.permute.xlu0 %601
        %605 = vset.pattern.permute.xlu0 0
        %606 = vperm.xlu0 %605, %v586
        %v607 = vpop.permute.xlu0 %606
        %610 = vset.pattern.permute.xlu0 0
        %611 = vperm.xlu0 %610, %v587
        %v612 = vpop.permute.xlu0 %611
        %615 = vset.pattern.permute.xlu0 0
        %616 = vperm.xlu0 %615, %v588
        %v617 = vpop.permute.xlu0 %616
        %620 = vset.pattern.permute.xlu0 0
        %621 = vperm.xlu0 %620, %v589
        %v622 = vpop.permute.xlu0 %621
        %625 = vset.pattern.permute.xlu0 0
        %626 = vperm.xlu0 %625, %v590
        %v627 = vpop.permute.xlu0 %626
        %630 = vset.pattern.permute.xlu0 0
        %631 = vperm.xlu0 %630, %v591
        %v632 = vpop.permute.xlu0 %631
        %635 = vset.pattern.permute.xlu0 0
        %636 = vperm.xlu0 %635, %v592
        %v637 = vpop.permute.xlu0 %636
        %640 = vset.pattern.permute.xlu0 0
        %641 = vperm.xlu0 %640, %v593
        %v642 = vpop.permute.xlu0 %641
        %645 = vset.pattern.permute.xlu0 0
        %646 = vperm.xlu0 %645, %v594
        %v647 = vpop.permute.xlu0 %646
        %650 = vset.pattern.permute.xlu0 0
        %651 = vperm.xlu0 %650, %v595
        %v652 = vpop.permute.xlu0 %651
        %655 = vset.pattern.permute.xlu0 0
        %656 = vperm.xlu0 %655, %v596
        %v657 = vpop.permute.xlu0 %656
        %660 = vset.pattern.permute.xlu0 0
        %661 = vperm.xlu0 %660, %v597
        %v662 = vpop.permute.xlu0 %661
        %665 = vset.pattern.permute.xlu0 0
        %666 = vperm.xlu0 %665, %v598
        %v667 = vpop.permute.xlu0 %666
        %v669 = vmul.f32 %v571, %v602
        %v670 = vmul.f32 %v572, %v607
        %v671 = vmul.f32 %v573, %v612
        %v672 = vmul.f32 %v574, %v617
        %v673 = vmul.f32 %v575, %v622
        %v674 = vmul.f32 %v576, %v627
        %v675 = vmul.f32 %v577, %v632
        %v676 = vmul.f32 %v578, %v637
        %v677 = vmul.f32 %v579, %v642
        %v678 = vmul.f32 %v580, %v647
        %v679 = vmul.f32 %v581, %v652
        %v680 = vmul.f32 %v582, %v657
        %v681 = vmul.f32 %v583, %v662
        %v682 = vmul.f32 %v584, %v667
        %v683 = vpack.c.bf16 %v670, %v669
        %v684 = vpack.c.bf16 %v672, %v671
        %v685 = vpack.c.bf16 %v674, %v673
        %v686 = vpack.c.bf16 %v676, %v675
        %v687 = vpack.c.bf16 %v678, %v677
        %v688 = vpack.c.bf16 %v680, %v679
        %v689 = vpack.c.bf16 %v682, %v681
        %v690 = vld [vmem:[#allocation2] sm:$0xf]
        %v691 = vld [vmem:[#allocation2 + $0x4] sm:$0xf]
        %v692 = vld [vmem:[#allocation2 + $0x8] sm:$0xf]
        %v693 = vld [vmem:[#allocation2 + $0xc] sm:$0xf]
        %v694 = vld [vmem:[#allocation2 + $0x10] sm:$0xf]
        %v695 = vld [vmem:[#allocation2 + $0x14] sm:$0xf]
        %v696 = vld [vmem:[#allocation2 + $0x18] sm:$0xf]
        %v697 = vld [vmem:[#allocation2 + $0x1c] sm:$0xf]
        %v698 = vld [vmem:[#allocation2 + $0x20] sm:$0xf]
        %v699 = vld [vmem:[#allocation2 + $0x24] sm:$0xf]
        %v700 = vld [vmem:[#allocation2 + $0x28] sm:$0xf]
        %v701 = vld [vmem:[#allocation2 + $0x2c] sm:$0xf]
        %v702 = vld [vmem:[#allocation2 + $0x30] sm:$0xf]
        %v703 = vld [vmem:[#allocation2 + $0x34] sm:$0xf]
        %v704 = vld [vmem:[#allocation2 + $0x38] sm:$0xf]
        %v705 = vld [vmem:[#allocation2 + $0x3c] sm:$0xf]
        %s706 = scalar_lea.vmem [#allocation2], 64
        %v707 = vld [vmem:[%s706] sm:$0xf]
        %v708 = vld [vmem:[%s706 + $0x4] sm:$0xf]
        %v709 = vld [vmem:[%s706 + $0x8] sm:$0xf]
        %v710 = vld [vmem:[%s706 + $0xc] sm:$0xf]
        %v711 = vld [vmem:[%s706 + $0x10] sm:$0xf]
        %v712 = vld [vmem:[%s706 + $0x14] sm:$0xf]
        %v713 = vld [vmem:[%s706 + $0x18] sm:$0xf]
        %v714 = vld [vmem:[%s706 + $0x1c] sm:$0xf]
        %v715 = vld [vmem:[%s706 + $0x20] sm:$0xf]
        %v716 = vld [vmem:[%s706 + $0x24] sm:$0xf]
        %v717 = vld [vmem:[%s706 + $0x28] sm:$0xf]
        %v718 = vld [vmem:[%s706 + $0x2c] sm:$0xf]
        %v719 = vld [vmem:[%s706 + $0x30] sm:$0xf]
        %v720 = vld [vmem:[%s706 + $0x34] sm:$0xf]
        %v721 = vld [vmem:[%s706 + $0x38] sm:$0xf]
        %v722 = vld [vmem:[%s706 + $0x3c] sm:$0xf]
        %vm723 = vsmask.f32 7424
        %v725 = vshrl.u32 %v683, 16
        %v727 = vshll.u32 %v683, 16
        %v729 = vrot.slane %v727, 1
        %v730 = vor.u32 %v725, %v729
        %v732 = vshll.u32 %v684, 16
        %v734 = vrot.slane %v732, 1
        %v735 = vsel %vm723, %v730, %v734
        %v736 = vshrl.u32 %v684, 16
        %v738 = vor.u32 %v736, %v734
        %v740 = vshll.u32 %v685, 16
        %v742 = vrot.slane %v740, 1
        %v743 = vsel %vm723, %v738, %v742
        %v744 = vshrl.u32 %v685, 16
        %v746 = vor.u32 %v744, %v742
        %v748 = vshll.u32 %v686, 16
        %v750 = vrot.slane %v748, 1
        %v751 = vsel %vm723, %v746, %v750
        %v752 = vshrl.u32 %v686, 16
        %v754 = vor.u32 %v752, %v750
        %v756 = vshll.u32 %v687, 16
        %v758 = vrot.slane %v756, 1
        %v759 = vsel %vm723, %v754, %v758
        %v760 = vshrl.u32 %v687, 16
        %v762 = vor.u32 %v760, %v758
        %v764 = vshll.u32 %v688, 16
        %v766 = vrot.slane %v764, 1
        %v767 = vsel %vm723, %v762, %v766
        %v789 = vunpack.c.l.b16 %v707
        %v790 = vunpack.c.l.b16 %v708
        %v791 = vunpack.c.l.b16 %v709
        %v792 = vunpack.c.l.b16 %v710
        %v793 = vunpack.c.l.b16 %v711
        %v794 = vunpack.c.l.b16 %v712
        %v795 = vunpack.c.l.b16 %v713
        %v796 = vunpack.c.l.b16 %v714
        %v797 = vunpack.c.l.b16 %v715
        %v798 = vunpack.c.l.b16 %v716
        %v799 = vunpack.c.l.b16 %v717
        %v800 = vunpack.c.l.b16 %v718
        %v801 = vunpack.c.l.b16 %v719
        %v802 = vunpack.c.l.b16 %v720
        %v803 = vunpack.c.l.b16 %v721
        %v804 = vunpack.c.l.b16 %v722
        %v805 = vpack.c.b16 %v790, %v789
        %v806 = vpack.c.b16 %v792, %v791
        %v807 = vpack.c.b16 %v794, %v793
        %v808 = vpack.c.b16 %v796, %v795
        %v809 = vpack.c.b16 %v798, %v797
        %v810 = vpack.c.b16 %v800, %v799
        %v811 = vpack.c.b16 %v802, %v801
        %v812 = vpack.c.b16 %v804, %v803
        %821 = vmatprep.subr.bf16.mxu0 0
        %822 = vmatpush1.bf16.msra.mxu0 %v805
        %823 = vmatprep.subr.bf16.mxu0 0
        %824 = vmatpush1.bf16.msra.mxu0 %v806
        %825 = vmatprep.subr.bf16.mxu0 0
        %826 = vmatpush1.bf16.msra.mxu0 %v807
        %827 = vmatprep.subr.bf16.mxu0 0
        %828 = vmatpush1.bf16.msra.mxu0 %v808
        %829 = vmatprep.subr.bf16.mxu0 0
        %830 = vmatpush1.bf16.msra.mxu0 %v809
        %831 = vmatprep.subr.bf16.mxu0 0
        %832 = vmatpush1.bf16.msra.mxu0 %v810
        %833 = vmatprep.subr.bf16.mxu0 0
        %834 = vmatpush1.bf16.msra.mxu0 %v811
        %835 = vmatprep.subr.bf16.mxu0 0
        %836 = vmatpush1.bf16.msra.mxu0 %v812
        %837 = vmatprep.subr.bf16.mxu0 0
        %838 = vmatpush1.bf16.msra.mxu0 0
        %839 = vmatprep.subr.bf16.mxu0 0
        %840 = vmatpush1.bf16.msra.mxu0 0
        %841 = vmatprep.subr.bf16.mxu0 0
        %842 = vmatpush1.bf16.msra.mxu0 0
        %843 = vmatprep.subr.bf16.mxu0 0
        %844 = vmatpush1.bf16.msra.mxu0 0
        %845 = vmatprep.subr.bf16.mxu0 0
        %846 = vmatpush1.bf16.msra.mxu0 0
        %847 = vmatprep.subr.bf16.mxu0 0
        %848 = vmatpush1.bf16.msra.mxu0 0
        %849 = vmatprep.subr.bf16.mxu0 0
        %850 = vmatpush1.bf16.msra.mxu0 0
        %851 = vmatprep.subr.bf16.mxu0 0
        %852 = vmatpush1.bf16.msra.mxu0 0
        %853 = vmatprep.mubr.bf16.mxu0 0
        %854 = vmatmul.mubr.bf16.gmra.mrb[0].mxu0 %v735
        %v855 = vpop.f32.mrb[0].mxu0
        %v856 = vadd.f32 0.0, %v855
        %v857 = vpop.f32.mrb[0].mxu0
        %v858 = vpop.f32.mrb[0].mxu0
        %v859 = vadd.f32 0.0, %v858
        %v860 = vpop.f32.mrb[0].mxu0
        %861 = vmatprep.mubr.bf16.mxu0 0
        %862 = vmatmul.mubr.bf16.gmra.mrb[0].mxu0 %v743
        %v863 = vpop.f32.mrb[0].mxu0
        %v864 = vadd.f32 0.0, %v863
        %v865 = vpop.f32.mrb[0].mxu0
        %v866 = vpop.f32.mrb[0].mxu0
        %v867 = vadd.f32 0.0, %v866
        %v868 = vpop.f32.mrb[0].mxu0
        %869 = vmatprep.mubr.bf16.mxu0 0
        %870 = vmatmul.mubr.bf16.gmra.mrb[0].mxu0 %v751
        %v871 = vpop.f32.mrb[0].mxu0
        %v872 = vadd.f32 0.0, %v871
        %v873 = vpop.f32.mrb[0].mxu0
        %v874 = vpop.f32.mrb[0].mxu0
        %v875 = vadd.f32 0.0, %v874
        %v876 = vpop.f32.mrb[0].mxu0
        %877 = vmatprep.mubr.bf16.mxu0 0
        %878 = vmatmul.mubr.bf16.gmra.mrb[0].mxu0 %v759
        %v879 = vpop.f32.mrb[0].mxu0
        %v880 = vadd.f32 0.0, %v879
        %v881 = vpop.f32.mrb[0].mxu0
        %v882 = vpop.f32.mrb[0].mxu0
        %v883 = vadd.f32 0.0, %v882
        %v884 = vpop.f32.mrb[0].mxu0
        %885 = vmatprep.mubr.bf16.mxu0 0
        %886 = vmatmul.mubr.bf16.gmra.mrb[0].mxu0 %v767
        %v887 = vpop.f32.mrb[0].mxu0
        %v888 = vadd.f32 0.0, %v887
        %v889 = vpop.f32.mrb[0].mxu0
        %v890 = vpop.f32.mrb[0].mxu0
        %v891 = vadd.f32 0.0, %v890
        %v892 = vpop.f32.mrb[0].mxu0
        %893 = vdwg.mxu0
        %v910 = vunpack.c.l.b16 %v690
        %v911 = vunpack.c.l.b16 %v691
        %v912 = vunpack.c.l.b16 %v692
        %v913 = vunpack.c.l.b16 %v693
        %v914 = vunpack.c.l.b16 %v694
        %v915 = vunpack.c.l.b16 %v695
        %v916 = vunpack.c.l.b16 %v696
        %v917 = vunpack.c.l.b16 %v697
        %v918 = vunpack.c.l.b16 %v698
        %v919 = vunpack.c.l.b16 %v699
        %v920 = vunpack.c.l.b16 %v700
        %v921 = vunpack.c.l.b16 %v701
        %v922 = vunpack.c.l.b16 %v702
        %v923 = vunpack.c.l.b16 %v703
        %v924 = vunpack.c.l.b16 %v704
        %v925 = vunpack.c.l.b16 %v705
        %v926 = vpack.c.b16 %v911, %v910
        %v927 = vpack.c.b16 %v913, %v912
        %v928 = vpack.c.b16 %v915, %v914
        %v929 = vpack.c.b16 %v917, %v916
        %v930 = vpack.c.b16 %v919, %v918
        %v931 = vpack.c.b16 %v921, %v920
        %v932 = vpack.c.b16 %v923, %v922
        %v933 = vpack.c.b16 %v925, %v924
        %942 = vmatprep.subr.bf16.mxu0 0
        %943 = vmatpush1.bf16.msra.mxu0 %v926
        %944 = vmatprep.subr.bf16.mxu0 0
        %945 = vmatpush1.bf16.msra.mxu0 %v927
        %946 = vmatprep.subr.bf16.mxu0 0
        %947 = vmatpush1.bf16.msra.mxu0 %v928
        %948 = vmatprep.subr.bf16.mxu0 0
        %949 = vmatpush1.bf16.msra.mxu0 %v929
        %950 = vmatprep.subr.bf16.mxu0 0
        %951 = vmatpush1.bf16.msra.mxu0 %v930
        %952 = vmatprep.subr.bf16.mxu0 0
        %953 = vmatpush1.bf16.msra.mxu0 %v931
        %954 = vmatprep.subr.bf16.mxu0 0
        %955 = vmatpush1.bf16.msra.mxu0 %v932
        %956 = vmatprep.subr.bf16.mxu0 0
        %957 = vmatpush1.bf16.msra.mxu0 %v933
        %958 = vmatprep.subr.bf16.mxu0 0
        %959 = vmatpush1.bf16.msra.mxu0 0
        %960 = vmatprep.subr.bf16.mxu0 0
        %961 = vmatpush1.bf16.msra.mxu0 0
        %962 = vmatprep.subr.bf16.mxu0 0
        %963 = vmatpush1.bf16.msra.mxu0 0
        %964 = vmatprep.subr.bf16.mxu0 0
        %965 = vmatpush1.bf16.msra.mxu0 0
        %966 = vmatprep.subr.bf16.mxu0 0
        %967 = vmatpush1.bf16.msra.mxu0 0
        %968 = vmatprep.subr.bf16.mxu0 0
        %969 = vmatpush1.bf16.msra.mxu0 0
        %970 = vmatprep.subr.bf16.mxu0 0
        %971 = vmatpush1.bf16.msra.mxu0 0
        %972 = vmatprep.subr.bf16.mxu0 0
        %973 = vmatpush1.bf16.msra.mxu0 0
        %974 = vmatprep.mubr.bf16.mxu0 0
        %975 = vmatmul.mubr.bf16.gmra.mrb[0].mxu0 %v683
        %v976 = vpop.f32.mrb[0].mxu0
        %v977 = vadd.f32 %v856, %v976
        %v978 = vpop.f32.mrb[0].mxu0
        %v979 = vpop.f32.mrb[0].mxu0
        %v980 = vadd.f32 %v859, %v979
        %v981 = vpop.f32.mrb[0].mxu0
        %982 = vmatprep.mubr.bf16.mxu0 0
        %983 = vmatmul.mubr.bf16.gmra.mrb[0].mxu0 %v684
        %v984 = vpop.f32.mrb[0].mxu0
        %v985 = vadd.f32 %v864, %v984
        %v986 = vpop.f32.mrb[0].mxu0
        %v987 = vpop.f32.mrb[0].mxu0
        %v988 = vadd.f32 %v867, %v987
        %v989 = vpop.f32.mrb[0].mxu0
        %990 = vmatprep.mubr.bf16.mxu0 0
        %991 = vmatmul.mubr.bf16.gmra.mrb[0].mxu0 %v685
        %v992 = vpop.f32.mrb[0].mxu0
        %v993 = vadd.f32 %v872, %v992
        %v994 = vpop.f32.mrb[0].mxu0
        %v995 = vpop.f32.mrb[0].mxu0
        %v996 = vadd.f32 %v875, %v995
        %v997 = vpop.f32.mrb[0].mxu0
        %998 = vmatprep.mubr.bf16.mxu0 0
        %999 = vmatmul.mubr.bf16.gmra.mrb[0].mxu0 %v686
        %v1000 = vpop.f32.mrb[0].mxu0
        %v1001 = vadd.f32 %v880, %v1000
        %v1002 = vpop.f32.mrb[0].mxu0
        %v1003 = vpop.f32.mrb[0].mxu0
        %v1004 = vadd.f32 %v883, %v1003
        %v1005 = vpop.f32.mrb[0].mxu0
        %1006 = vmatprep.mubr.bf16.mxu0 0
        %1007 = vmatmul.mubr.bf16.gmra.mrb[0].mxu0 %v687
        %v1008 = vpop.f32.mrb[0].mxu0
        %v1009 = vadd.f32 %v888, %v1008
        %v1010 = vpop.f32.mrb[0].mxu0
        %v1011 = vpop.f32.mrb[0].mxu0
        %v1012 = vadd.f32 %v891, %v1011
        %v1013 = vpop.f32.mrb[0].mxu0
        %1014 = vdwg.mxu0
        %s1015 = scalar_lea.vmem [#allocation2], 128
        %v1016 = vld [vmem:[%s1015] sm:$0xf]
        %v1017 = vld [vmem:[%s1015 + $0x4] sm:$0xf]
        %v1018 = vld [vmem:[%s1015 + $0x8] sm:$0xf]
        %v1019 = vld [vmem:[%s1015 + $0xc] sm:$0xf]
        %v1020 = vld [vmem:[%s1015 + $0x10] sm:$0xf]
        %v1021 = vld [vmem:[%s1015 + $0x14] sm:$0xf]
        %v1022 = vld [vmem:[%s1015 + $0x18] sm:$0xf]
        %v1023 = vld [vmem:[%s1015 + $0x1c] sm:$0xf]
        %v1024 = vld [vmem:[%s1015 + $0x20] sm:$0xf]
        %v1025 = vld [vmem:[%s1015 + $0x24] sm:$0xf]
        %v1026 = vld [vmem:[%s1015 + $0x28] sm:$0xf]
        %v1027 = vld [vmem:[%s1015 + $0x2c] sm:$0xf]
        %v1028 = vld [vmem:[%s1015 + $0x30] sm:$0xf]
        %v1029 = vld [vmem:[%s1015 + $0x34] sm:$0xf]
        %v1030 = vld [vmem:[%s1015 + $0x38] sm:$0xf]
        %v1031 = vld [vmem:[%s1015 + $0x3c] sm:$0xf]
        %vm1038 = vcmask 1046528
        %v1039 = vrot.slane %v683, 1
        %v1040 = vrot.slane %v684, 1
        %v1041 = vsel %vm1038, %v1039, %v1040
        %v1042 = vrot.slane %v685, 1
        %v1043 = vsel %vm1038, %v1040, %v1042
        %v1044 = vrot.slane %v686, 1
        %v1045 = vsel %vm1038, %v1042, %v1044
        %v1046 = vrot.slane %v687, 1
        %v1047 = vsel %vm1038, %v1044, %v1046
        %v1048 = vrot.slane %v688, 1
        %v1049 = vsel %vm1038, %v1046, %v1048
        %v1071 = vunpack.c.l.b16 %v1016
        %v1072 = vunpack.c.l.b16 %v1017
        %v1073 = vunpack.c.l.b16 %v1018
        %v1074 = vunpack.c.l.b16 %v1019
        %v1075 = vunpack.c.l.b16 %v1020
        %v1076 = vunpack.c.l.b16 %v1021
        %v1077 = vunpack.c.l.b16 %v1022
        %v1078 = vunpack.c.l.b16 %v1023
        %v1079 = vunpack.c.l.b16 %v1024
        %v1080 = vunpack.c.l.b16 %v1025
        %v1081 = vunpack.c.l.b16 %v1026
        %v1082 = vunpack.c.l.b16 %v1027
        %v1083 = vunpack.c.l.b16 %v1028
        %v1084 = vunpack.c.l.b16 %v1029
        %v1085 = vunpack.c.l.b16 %v1030
        %v1086 = vunpack.c.l.b16 %v1031
        %v1087 = vpack.c.b16 %v1072, %v1071
        %v1088 = vpack.c.b16 %v1074, %v1073
        %v1089 = vpack.c.b16 %v1076, %v1075
        %v1090 = vpack.c.b16 %v1078, %v1077
        %v1091 = vpack.c.b16 %v1080, %v1079
        %v1092 = vpack.c.b16 %v1082, %v1081
        %v1093 = vpack.c.b16 %v1084, %v1083
        %v1094 = vpack.c.b16 %v1086, %v1085
        %1103 = vmatprep.subr.bf16.mxu0 0
        %1104 = vmatpush1.bf16.msra.mxu0 %v1087
        %1105 = vmatprep.subr.bf16.mxu0 0
        %1106 = vmatpush1.bf16.msra.mxu0 %v1088
        %1107 = vmatprep.subr.bf16.mxu0 0
        %1108 = vmatpush1.bf16.msra.mxu0 %v1089
        %1109 = vmatprep.subr.bf16.mxu0 0
        %1110 = vmatpush1.bf16.msra.mxu0 %v1090
        %1111 = vmatprep.subr.bf16.mxu0 0
        %1112 = vmatpush1.bf16.msra.mxu0 %v1091
        %1113 = vmatprep.subr.bf16.mxu0 0
        %1114 = vmatpush1.bf16.msra.mxu0 %v1092
        %1115 = vmatprep.subr.bf16.mxu0 0
        %1116 = vmatpush1.bf16.msra.mxu0 %v1093
        %1117 = vmatprep.subr.bf16.mxu0 0
        %1118 = vmatpush1.bf16.msra.mxu0 %v1094
        %1119 = vmatprep.subr.bf16.mxu0 0
        %1120 = vmatpush1.bf16.msra.mxu0 0
        %1121 = vmatprep.subr.bf16.mxu0 0
        %1122 = vmatpush1.bf16.msra.mxu0 0
        %1123 = vmatprep.subr.bf16.mxu0 0
        %1124 = vmatpush1.bf16.msra.mxu0 0
        %1125 = vmatprep.subr.bf16.mxu0 0
        %1126 = vmatpush1.bf16.msra.mxu0 0
        %1127 = vmatprep.subr.bf16.mxu0 0
        %1128 = vmatpush1.bf16.msra.mxu0 0
        %1129 = vmatprep.subr.bf16.mxu0 0
        %1130 = vmatpush1.bf16.msra.mxu0 0
        %1131 = vmatprep.subr.bf16.mxu0 0
        %1132 = vmatpush1.bf16.msra.mxu0 0
        %1133 = vmatprep.subr.bf16.mxu0 0
        %1134 = vmatpush1.bf16.msra.mxu0 0
        %1135 = vmatprep.mubr.bf16.mxu0 0
        %1136 = vmatmul.mubr.bf16.gmra.mrb[0].mxu0 %v1041
        %v1137 = vpop.f32.mrb[0].mxu0
        %v1138 = vadd.f32 0.0, %v1137
        %v1139 = vpop.f32.mrb[0].mxu0
        %v1140 = vpop.f32.mrb[0].mxu0
        %v1141 = vadd.f32 0.0, %v1140
        %v1142 = vpop.f32.mrb[0].mxu0
        %1143 = vmatprep.mubr.bf16.mxu0 0
        %1144 = vmatmul.mubr.bf16.gmra.mrb[0].mxu0 %v1043
        %v1145 = vpop.f32.mrb[0].mxu0
        %v1146 = vadd.f32 0.0, %v1145
        %v1147 = vpop.f32.mrb[0].mxu0
        %v1148 = vpop.f32.mrb[0].mxu0
        %v1149 = vadd.f32 0.0, %v1148
        %v1150 = vpop.f32.mrb[0].mxu0
        %1151 = vmatprep.mubr.bf16.mxu0 0
        %1152 = vmatmul.mubr.bf16.gmra.mrb[0].mxu0 %v1045
        %v1153 = vpop.f32.mrb[0].mxu0
        %v1154 = vadd.f32 0.0, %v1153
        %v1155 = vpop.f32.mrb[0].mxu0
        %v1156 = vpop.f32.mrb[0].mxu0
        %v1157 = vadd.f32 0.0, %v1156
        %v1158 = vpop.f32.mrb[0].mxu0
        %1159 = vmatprep.mubr.bf16.mxu0 0
        %1160 = vmatmul.mubr.bf16.gmra.mrb[0].mxu0 %v1047
        %v1161 = vpop.f32.mrb[0].mxu0
        %v1162 = vadd.f32 0.0, %v1161
        %v1163 = vpop.f32.mrb[0].mxu0
        %v1164 = vpop.f32.mrb[0].mxu0
        %v1165 = vadd.f32 0.0, %v1164
        %v1166 = vpop.f32.mrb[0].mxu0
        %1167 = vmatprep.mubr.bf16.mxu0 0
        %1168 = vmatmul.mubr.bf16.gmra.mrb[0].mxu0 %v1049
        %v1169 = vpop.f32.mrb[0].mxu0
        %v1170 = vadd.f32 0.0, %v1169
        %v1171 = vpop.f32.mrb[0].mxu0
        %v1172 = vpop.f32.mrb[0].mxu0
        %v1173 = vadd.f32 0.0, %v1172
        %v1174 = vpop.f32.mrb[0].mxu0
        %1175 = vdwg.mxu0
        %v1176 = vadd.f32 %v977, %v1138
        %v1177 = vadd.f32 %v980, %v1141
        %v1178 = vadd.f32 %v985, %v1146
        %v1179 = vadd.f32 %v988, %v1149
        %v1180 = vadd.f32 %v993, %v1154
        %v1181 = vadd.f32 %v996, %v1157
        %v1182 = vadd.f32 %v1001, %v1162
        %v1183 = vadd.f32 %v1004, %v1165
        %v1184 = vadd.f32 %v1009, %v1170
        %v1185 = vadd.f32 %v1012, %v1173
        %s1186 = scalar_lea.vmem [#allocation2], 192
        %v1187 = vld [vmem:[%s1186] sm:$0xf]
        %v1188 = vld [vmem:[%s1186 + $0x4] sm:$0xf]
        %v1189 = vld [vmem:[%s1186 + $0x8] sm:$0xf]
        %v1190 = vld [vmem:[%s1186 + $0xc] sm:$0xf]
        %v1191 = vld [vmem:[%s1186 + $0x10] sm:$0xf]
        %v1192 = vld [vmem:[%s1186 + $0x14] sm:$0xf]
        %v1193 = vld [vmem:[%s1186 + $0x18] sm:$0xf]
        %v1194 = vld [vmem:[%s1186 + $0x1c] sm:$0xf]
        %v1195 = vld [vmem:[%s1186 + $0x20] sm:$0xf]
        %v1196 = vld [vmem:[%s1186 + $0x24] sm:$0xf]
        %v1197 = vld [vmem:[%s1186 + $0x28] sm:$0xf]
        %v1198 = vld [vmem:[%s1186 + $0x2c] sm:$0xf]
        %v1199 = vld [vmem:[%s1186 + $0x30] sm:$0xf]
        %v1200 = vld [vmem:[%s1186 + $0x34] sm:$0xf]
        %v1201 = vld [vmem:[%s1186 + $0x38] sm:$0xf]
        %v1202 = vld [vmem:[%s1186 + $0x3c] sm:$0xf]
        %vm1203 = vcmask 1042432
        %v1204 = vrot.slane %v683, 5
        %v1205 = vrot.slane %v684, 5
        %v1206 = vsel %vm1203, %v1204, %v1205
        %v1207 = vrot.slane %v685, 5
        %v1208 = vsel %vm1203, %v1205, %v1207
        %v1209 = vrot.slane %v686, 5
        %v1210 = vsel %vm1203, %v1207, %v1209
        %v1211 = vrot.slane %v687, 5
        %v1212 = vsel %vm1203, %v1209, %v1211
        %v1213 = vrot.slane %v688, 5
        %v1214 = vsel %vm1203, %v1211, %v1213
        %v1236 = vunpack.c.l.b16 %v1187
        %v1237 = vunpack.c.l.b16 %v1188
        %v1238 = vunpack.c.l.b16 %v1189
        %v1239 = vunpack.c.l.b16 %v1190
        %v1240 = vunpack.c.l.b16 %v1191
        %v1241 = vunpack.c.l.b16 %v1192
        %v1242 = vunpack.c.l.b16 %v1193
        %v1243 = vunpack.c.l.b16 %v1194
        %v1244 = vunpack.c.l.b16 %v1195
        %v1245 = vunpack.c.l.b16 %v1196
        %v1246 = vunpack.c.l.b16 %v1197
        %v1247 = vunpack.c.l.b16 %v1198
        %v1248 = vunpack.c.l.b16 %v1199
        %v1249 = vunpack.c.l.b16 %v1200
        %v1250 = vunpack.c.l.b16 %v1201
        %v1251 = vunpack.c.l.b16 %v1202
        %v1252 = vpack.c.b16 %v1237, %v1236
        %v1253 = vpack.c.b16 %v1239, %v1238
        %v1254 = vpack.c.b16 %v1241, %v1240
        %v1255 = vpack.c.b16 %v1243, %v1242
        %v1256 = vpack.c.b16 %v1245, %v1244
        %v1257 = vpack.c.b16 %v1247, %v1246
        %v1258 = vpack.c.b16 %v1249, %v1248
        %v1259 = vpack.c.b16 %v1251, %v1250
        %1268 = vmatprep.subr.bf16.mxu0 0
        %1269 = vmatpush1.bf16.msra.mxu0 %v1252
        %1270 = vmatprep.subr.bf16.mxu0 0
        %1271 = vmatpush1.bf16.msra.mxu0 %v1253
        %1272 = vmatprep.subr.bf16.mxu0 0
        %1273 = vmatpush1.bf16.msra.mxu0 %v1254
        %1274 = vmatprep.subr.bf16.mxu0 0
        %1275 = vmatpush1.bf16.msra.mxu0 %v1255
        %1276 = vmatprep.subr.bf16.mxu0 0
        %1277 = vmatpush1.bf16.msra.mxu0 %v1256
        %1278 = vmatprep.subr.bf16.mxu0 0
        %1279 = vmatpush1.bf16.msra.mxu0 %v1257
        %1280 = vmatprep.subr.bf16.mxu0 0
        %1281 = vmatpush1.bf16.msra.mxu0 %v1258
        %1282 = vmatprep.subr.bf16.mxu0 0
        %1283 = vmatpush1.bf16.msra.mxu0 %v1259
        %1284 = vmatprep.subr.bf16.mxu0 0
        %1285 = vmatpush1.bf16.msra.mxu0 0
        %1286 = vmatprep.subr.bf16.mxu0 0
        %1287 = vmatpush1.bf16.msra.mxu0 0
        %1288 = vmatprep.subr.bf16.mxu0 0
        %1289 = vmatpush1.bf16.msra.mxu0 0
        %1290 = vmatprep.subr.bf16.mxu0 0
        %1291 = vmatpush1.bf16.msra.mxu0 0
        %1292 = vmatprep.subr.bf16.mxu0 0
        %1293 = vmatpush1.bf16.msra.mxu0 0
        %1294 = vmatprep.subr.bf16.mxu0 0
        %1295 = vmatpush1.bf16.msra.mxu0 0
        %1296 = vmatprep.subr.bf16.mxu0 0
        %1297 = vmatpush1.bf16.msra.mxu0 0
        %1298 = vmatprep.subr.bf16.mxu0 0
        %1299 = vmatpush1.bf16.msra.mxu0 0
        %1300 = vmatprep.mubr.bf16.mxu0 0
        %1301 = vmatmul.mubr.bf16.gmra.mrb[0].mxu0 %v1206
        %v1302 = vpop.f32.mrb[0].mxu0
        %v1303 = vadd.f32 0.0, %v1302
        %v1304 = vpop.f32.mrb[0].mxu0
        %v1305 = vpop.f32.mrb[0].mxu0
        %v1306 = vadd.f32 0.0, %v1305
        %v1307 = vpop.f32.mrb[0].mxu0
        %1308 = vmatprep.mubr.bf16.mxu0 0
        %1309 = vmatmul.mubr.bf16.gmra.mrb[0].mxu0 %v1208
        %v1310 = vpop.f32.mrb[0].mxu0
        %v1311 = vadd.f32 0.0, %v1310
        %v1312 = vpop.f32.mrb[0].mxu0
        %v1313 = vpop.f32.mrb[0].mxu0
        %v1314 = vadd.f32 0.0, %v1313
        %v1315 = vpop.f32.mrb[0].mxu0
        %1316 = vmatprep.mubr.bf16.mxu0 0
        %1317 = vmatmul.mubr.bf16.gmra.mrb[0].mxu0 %v1210
        %v1318 = vpop.f32.mrb[0].mxu0
        %v1319 = vadd.f32 0.0, %v1318
        %v1320 = vpop.f32.mrb[0].mxu0
        %v1321 = vpop.f32.mrb[0].mxu0
        %v1322 = vadd.f32 0.0, %v1321
        %v1323 = vpop.f32.mrb[0].mxu0
        %1324 = vmatprep.mubr.bf16.mxu0 0
        %1325 = vmatmul.mubr.bf16.gmra.mrb[0].mxu0 %v1212
        %v1326 = vpop.f32.mrb[0].mxu0
        %v1327 = vadd.f32 0.0, %v1326
        %v1328 = vpop.f32.mrb[0].mxu0
        %v1329 = vpop.f32.mrb[0].mxu0
        %v1330 = vadd.f32 0.0, %v1329
        %v1331 = vpop.f32.mrb[0].mxu0
        %1332 = vmatprep.mubr.bf16.mxu0 0
        %1333 = vmatmul.mubr.bf16.gmra.mrb[0].mxu0 %v1214
        %v1334 = vpop.f32.mrb[0].mxu0
        %v1335 = vadd.f32 0.0, %v1334
        %v1336 = vpop.f32.mrb[0].mxu0
        %v1337 = vpop.f32.mrb[0].mxu0
        %v1338 = vadd.f32 0.0, %v1337
        %v1339 = vpop.f32.mrb[0].mxu0
        %1340 = vdwg.mxu0
        %v1341 = vadd.f32 %v1176, %v1303
        %v1342 = vadd.f32 %v1177, %v1306
        %v1343 = vadd.f32 %v1178, %v1311
        %v1344 = vadd.f32 %v1179, %v1314
        %v1345 = vadd.f32 %v1180, %v1319
        %v1346 = vadd.f32 %v1181, %v1322
        %v1347 = vadd.f32 %v1182, %v1327
        %v1348 = vadd.f32 %v1183, %v1330
        %v1349 = vadd.f32 %v1184, %v1335
        %v1350 = vadd.f32 %v1185, %v1338
        %s1351 = scalar_lea.vmem [#allocation2], 256
        %v1352 = vld [vmem:[%s1351] sm:$0xf]
        %v1353 = vld [vmem:[%s1351 + $0x4] sm:$0xf]
        %v1354 = vld [vmem:[%s1351 + $0x8] sm:$0xf]
        %v1355 = vld [vmem:[%s1351 + $0xc] sm:$0xf]
        %v1356 = vld [vmem:[%s1351 + $0x10] sm:$0xf]
        %v1357 = vld [vmem:[%s1351 + $0x14] sm:$0xf]
        %v1358 = vld [vmem:[%s1351 + $0x18] sm:$0xf]
        %v1359 = vld [vmem:[%s1351 + $0x1c] sm:$0xf]
        %v1360 = vld [vmem:[%s1351 + $0x20] sm:$0xf]
        %v1361 = vld [vmem:[%s1351 + $0x24] sm:$0xf]
        %v1362 = vld [vmem:[%s1351 + $0x28] sm:$0xf]
        %v1363 = vld [vmem:[%s1351 + $0x2c] sm:$0xf]
        %v1364 = vld [vmem:[%s1351 + $0x30] sm:$0xf]
        %v1365 = vld [vmem:[%s1351 + $0x34] sm:$0xf]
        %v1366 = vld [vmem:[%s1351 + $0x38] sm:$0xf]
        %v1367 = vld [vmem:[%s1351 + $0x3c] sm:$0xf]
        %vm1368 = vsmask.f32 2304
        %v1369 = vrot.slane %v725, 5
        %v1370 = vrot.slane %v727, 6
        %v1371 = vor.u32 %v1369, %v1370
        %v1372 = vrot.slane %v736, 5
        %v1373 = vrot.slane %v732, 6
        %v1374 = vor.u32 %v1372, %v1373
        %v1375 = vsel %vm1368, %v1371, %v1374
        %v1376 = vrot.slane %v744, 5
        %v1377 = vrot.slane %v740, 6
        %v1378 = vor.u32 %v1376, %v1377
        %v1379 = vsel %vm1368, %v1374, %v1378
        %v1380 = vrot.slane %v752, 5
        %v1381 = vrot.slane %v748, 6
        %v1382 = vor.u32 %v1380, %v1381
        %v1383 = vsel %vm1368, %v1378, %v1382
        %v1384 = vrot.slane %v760, 5
        %v1385 = vrot.slane %v756, 6
        %v1386 = vor.u32 %v1384, %v1385
        %v1387 = vsel %vm1368, %v1382, %v1386
        %v1388 = vshrl.u32 %v688, 16
        %v1390 = vrot.slane %v1388, 5
        %v1391 = vrot.slane %v764, 6
        %v1392 = vor.u32 %v1390, %v1391
        %v1393 = vsel %vm1368, %v1386, %v1392
        %v1415 = vunpack.c.l.b16 %v1352
        %v1416 = vunpack.c.l.b16 %v1353
        %v1417 = vunpack.c.l.b16 %v1354
        %v1418 = vunpack.c.l.b16 %v1355
        %v1419 = vunpack.c.l.b16 %v1356
        %v1420 = vunpack.c.l.b16 %v1357
        %v1421 = vunpack.c.l.b16 %v1358
        %v1422 = vunpack.c.l.b16 %v1359
        %v1423 = vunpack.c.l.b16 %v1360
        %v1424 = vunpack.c.l.b16 %v1361
        %v1425 = vunpack.c.l.b16 %v1362
        %v1426 = vunpack.c.l.b16 %v1363
        %v1427 = vunpack.c.l.b16 %v1364
        %v1428 = vunpack.c.l.b16 %v1365
        %v1429 = vunpack.c.l.b16 %v1366
        %v1430 = vunpack.c.l.b16 %v1367
        %v1431 = vpack.c.b16 %v1416, %v1415
        %v1432 = vpack.c.b16 %v1418, %v1417
        %v1433 = vpack.c.b16 %v1420, %v1419
        %v1434 = vpack.c.b16 %v1422, %v1421
        %v1435 = vpack.c.b16 %v1424, %v1423
        %v1436 = vpack.c.b16 %v1426, %v1425
        %v1437 = vpack.c.b16 %v1428, %v1427
        %v1438 = vpack.c.b16 %v1430, %v1429
        %1447 = vmatprep.subr.bf16.mxu0 0
        %1448 = vmatpush1.bf16.msra.mxu0 %v1431
        %1449 = vmatprep.subr.bf16.mxu0 0
        %1450 = vmatpush1.bf16.msra.mxu0 %v1432
        %1451 = vmatprep.subr.bf16.mxu0 0
        %1452 = vmatpush1.bf16.msra.mxu0 %v1433
        %1453 = vmatprep.subr.bf16.mxu0 0
        %1454 = vmatpush1.bf16.msra.mxu0 %v1434
        %1455 = vmatprep.subr.bf16.mxu0 0
        %1456 = vmatpush1.bf16.msra.mxu0 %v1435
        %1457 = vmatprep.subr.bf16.mxu0 0
        %1458 = vmatpush1.bf16.msra.mxu0 %v1436
        %1459 = vmatprep.subr.bf16.mxu0 0
        %1460 = vmatpush1.bf16.msra.mxu0 %v1437
        %1461 = vmatprep.subr.bf16.mxu0 0
        %1462 = vmatpush1.bf16.msra.mxu0 %v1438
        %1463 = vmatprep.subr.bf16.mxu0 0
        %1464 = vmatpush1.bf16.msra.mxu0 0
        %1465 = vmatprep.subr.bf16.mxu0 0
        %1466 = vmatpush1.bf16.msra.mxu0 0
        %1467 = vmatprep.subr.bf16.mxu0 0
        %1468 = vmatpush1.bf16.msra.mxu0 0
        %1469 = vmatprep.subr.bf16.mxu0 0
        %1470 = vmatpush1.bf16.msra.mxu0 0
        %1471 = vmatprep.subr.bf16.mxu0 0
        %1472 = vmatpush1.bf16.msra.mxu0 0
        %1473 = vmatprep.subr.bf16.mxu0 0
        %1474 = vmatpush1.bf16.msra.mxu0 0
        %1475 = vmatprep.subr.bf16.mxu0 0
        %1476 = vmatpush1.bf16.msra.mxu0 0
        %1477 = vmatprep.subr.bf16.mxu0 0
        %1478 = vmatpush1.bf16.msra.mxu0 0
        %1479 = vmatprep.mubr.bf16.mxu0 0
        %1480 = vmatmul.mubr.bf16.gmra.mrb[0].mxu0 %v1375
        %v1481 = vpop.f32.mrb[0].mxu0
        %v1482 = vadd.f32 0.0, %v1481
        %v1483 = vpop.f32.mrb[0].mxu0
        %v1484 = vpop.f32.mrb[0].mxu0
        %v1485 = vadd.f32 0.0, %v1484
        %v1486 = vpop.f32.mrb[0].mxu0
        %1487 = vmatprep.mubr.bf16.mxu0 0
        %1488 = vmatmul.mubr.bf16.gmra.mrb[0].mxu0 %v1379
        %v1489 = vpop.f32.mrb[0].mxu0
        %v1490 = vadd.f32 0.0, %v1489
        %v1491 = vpop.f32.mrb[0].mxu0
        %v1492 = vpop.f32.mrb[0].mxu0
        %v1493 = vadd.f32 0.0, %v1492
        %v1494 = vpop.f32.mrb[0].mxu0
        %1495 = vmatprep.mubr.bf16.mxu0 0
        %1496 = vmatmul.mubr.bf16.gmra.mrb[0].mxu0 %v1383
        %v1497 = vpop.f32.mrb[0].mxu0
        %v1498 = vadd.f32 0.0, %v1497
        %v1499 = vpop.f32.mrb[0].mxu0
        %v1500 = vpop.f32.mrb[0].mxu0
        %v1501 = vadd.f32 0.0, %v1500
        %v1502 = vpop.f32.mrb[0].mxu0
        %1503 = vmatprep.mubr.bf16.mxu0 0
        %1504 = vmatmul.mubr.bf16.gmra.mrb[0].mxu0 %v1387
        %v1505 = vpop.f32.mrb[0].mxu0
        %v1506 = vadd.f32 0.0, %v1505
        %v1507 = vpop.f32.mrb[0].mxu0
        %v1508 = vpop.f32.mrb[0].mxu0
        %v1509 = vadd.f32 0.0, %v1508
        %v1510 = vpop.f32.mrb[0].mxu0
        %1511 = vmatprep.mubr.bf16.mxu0 0
        %1512 = vmatmul.mubr.bf16.gmra.mrb[0].mxu0 %v1393
        %v1513 = vpop.f32.mrb[0].mxu0
        %v1514 = vadd.f32 0.0, %v1513
        %v1515 = vpop.f32.mrb[0].mxu0
        %v1516 = vpop.f32.mrb[0].mxu0
        %v1517 = vadd.f32 0.0, %v1516
        %v1518 = vpop.f32.mrb[0].mxu0
        %1519 = vdwg.mxu0
        %v1520 = vadd.f32 %v1341, %v1482
        %v1521 = vadd.f32 %v1342, %v1485
        %v1522 = vadd.f32 %v1343, %v1490
        %v1523 = vadd.f32 %v1344, %v1493
        %v1524 = vadd.f32 %v1345, %v1498
        %v1525 = vadd.f32 %v1346, %v1501
        %v1526 = vadd.f32 %v1347, %v1506
        %v1527 = vadd.f32 %v1348, %v1509
        %v1528 = vadd.f32 %v1349, %v1514
        %v1529 = vadd.f32 %v1350, %v1517
        %s1530 = scalar_lea.vmem [#allocation2], 320
        %v1531 = vld [vmem:[%s1530] sm:$0xf]
        %v1532 = vld [vmem:[%s1530 + $0x4] sm:$0xf]
        %v1533 = vld [vmem:[%s1530 + $0x8] sm:$0xf]
        %v1534 = vld [vmem:[%s1530 + $0xc] sm:$0xf]
        %v1535 = vld [vmem:[%s1530 + $0x10] sm:$0xf]
        %v1536 = vld [vmem:[%s1530 + $0x14] sm:$0xf]
        %v1537 = vld [vmem:[%s1530 + $0x18] sm:$0xf]
        %v1538 = vld [vmem:[%s1530 + $0x1c] sm:$0xf]
        %v1539 = vld [vmem:[%s1530 + $0x20] sm:$0xf]
        %v1540 = vld [vmem:[%s1530 + $0x24] sm:$0xf]
        %v1541 = vld [vmem:[%s1530 + $0x28] sm:$0xf]
        %v1542 = vld [vmem:[%s1530 + $0x2c] sm:$0xf]
        %v1543 = vld [vmem:[%s1530 + $0x30] sm:$0xf]
        %v1544 = vld [vmem:[%s1530 + $0x34] sm:$0xf]
        %v1545 = vld [vmem:[%s1530 + $0x38] sm:$0xf]
        %v1546 = vld [vmem:[%s1530 + $0x3c] sm:$0xf]
        %vm1547 = vcmask 1041408
        %v1548 = vrot.slane %v683, 6
        %v1549 = vrot.slane %v684, 6
        %v1550 = vsel %vm1547, %v1548, %v1549
        %v1551 = vrot.slane %v685, 6
        %v1552 = vsel %vm1547, %v1549, %v1551
        %v1553 = vrot.slane %v686, 6
        %v1554 = vsel %vm1547, %v1551, %v1553
        %v1555 = vrot.slane %v687, 6
        %v1556 = vsel %vm1547, %v1553, %v1555
        %v1557 = vrot.slane %v688, 6
        %v1558 = vsel %vm1547, %v1555, %v1557
        %v1580 = vunpack.c.l.b16 %v1531
        %v1581 = vunpack.c.l.b16 %v1532
        %v1582 = vunpack.c.l.b16 %v1533
        %v1583 = vunpack.c.l.b16 %v1534
        %v1584 = vunpack.c.l.b16 %v1535
        %v1585 = vunpack.c.l.b16 %v1536
        %v1586 = vunpack.c.l.b16 %v1537
        %v1587 = vunpack.c.l.b16 %v1538
        %v1588 = vunpack.c.l.b16 %v1539
        %v1589 = vunpack.c.l.b16 %v1540
        %v1590 = vunpack.c.l.b16 %v1541
        %v1591 = vunpack.c.l.b16 %v1542
        %v1592 = vunpack.c.l.b16 %v1543
        %v1593 = vunpack.c.l.b16 %v1544
        %v1594 = vunpack.c.l.b16 %v1545
        %v1595 = vunpack.c.l.b16 %v1546
        %v1596 = vpack.c.b16 %v1581, %v1580
        %v1597 = vpack.c.b16 %v1583, %v1582
        %v1598 = vpack.c.b16 %v1585, %v1584
        %v1599 = vpack.c.b16 %v1587, %v1586
        %v1600 = vpack.c.b16 %v1589, %v1588
        %v1601 = vpack.c.b16 %v1591, %v1590
        %v1602 = vpack.c.b16 %v1593, %v1592
        %v1603 = vpack.c.b16 %v1595, %v1594
        %1612 = vmatprep.subr.bf16.mxu0 0
        %1613 = vmatpush1.bf16.msra.mxu0 %v1596
        %1614 = vmatprep.subr.bf16.mxu0 0
        %1615 = vmatpush1.bf16.msra.mxu0 %v1597
        %1616 = vmatprep.subr.bf16.mxu0 0
        %1617 = vmatpush1.bf16.msra.mxu0 %v1598
        %1618 = vmatprep.subr.bf16.mxu0 0
        %1619 = vmatpush1.bf16.msra.mxu0 %v1599
        %1620 = vmatprep.subr.bf16.mxu0 0
        %1621 = vmatpush1.bf16.msra.mxu0 %v1600
        %1622 = vmatprep.subr.bf16.mxu0 0
        %1623 = vmatpush1.bf16.msra.mxu0 %v1601
        %1624 = vmatprep.subr.bf16.mxu0 0
        %1625 = vmatpush1.bf16.msra.mxu0 %v1602
        %1626 = vmatprep.subr.bf16.mxu0 0
        %1627 = vmatpush1.bf16.msra.mxu0 %v1603
        %1628 = vmatprep.subr.bf16.mxu0 0
        %1629 = vmatpush1.bf16.msra.mxu0 0
        %1630 = vmatprep.subr.bf16.mxu0 0
        %1631 = vmatpush1.bf16.msra.mxu0 0
        %1632 = vmatprep.subr.bf16.mxu0 0
        %1633 = vmatpush1.bf16.msra.mxu0 0
        %1634 = vmatprep.subr.bf16.mxu0 0
        %1635 = vmatpush1.bf16.msra.mxu0 0
        %1636 = vmatprep.subr.bf16.mxu0 0
        %1637 = vmatpush1.bf16.msra.mxu0 0
        %1638 = vmatprep.subr.bf16.mxu0 0
        %1639 = vmatpush1.bf16.msra.mxu0 0
        %1640 = vmatprep.subr.bf16.mxu0 0
        %1641 = vmatpush1.bf16.msra.mxu0 0
        %1642 = vmatprep.subr.bf16.mxu0 0
        %1643 = vmatpush1.bf16.msra.mxu0 0
        %1644 = vmatprep.mubr.bf16.mxu0 0
        %1645 = vmatmul.mubr.bf16.gmra.mrb[0].mxu0 %v1550
        %v1646 = vpop.f32.mrb[0].mxu0
        %v1647 = vadd.f32 0.0, %v1646
        %v1648 = vpop.f32.mrb[0].mxu0
        %v1649 = vpop.f32.mrb[0].mxu0
        %v1650 = vadd.f32 0.0, %v1649
        %v1651 = vpop.f32.mrb[0].mxu0
        %1652 = vmatprep.mubr.bf16.mxu0 0
        %1653 = vmatmul.mubr.bf16.gmra.mrb[0].mxu0 %v1552
        %v1654 = vpop.f32.mrb[0].mxu0
        %v1655 = vadd.f32 0.0, %v1654
        %v1656 = vpop.f32.mrb[0].mxu0
        %v1657 = vpop.f32.mrb[0].mxu0
        %v1658 = vadd.f32 0.0, %v1657
        %v1659 = vpop.f32.mrb[0].mxu0
        %1660 = vmatprep.mubr.bf16.mxu0 0
        %1661 = vmatmul.mubr.bf16.gmra.mrb[0].mxu0 %v1554
        %v1662 = vpop.f32.mrb[0].mxu0
        %v1663 = vadd.f32 0.0, %v1662
        %v1664 = vpop.f32.mrb[0].mxu0
        %v1665 = vpop.f32.mrb[0].mxu0
        %v1666 = vadd.f32 0.0, %v1665
        %v1667 = vpop.f32.mrb[0].mxu0
        %1668 = vmatprep.mubr.bf16.mxu0 0
        %1669 = vmatmul.mubr.bf16.gmra.mrb[0].mxu0 %v1556
        %v1670 = vpop.f32.mrb[0].mxu0
        %v1671 = vadd.f32 0.0, %v1670
        %v1672 = vpop.f32.mrb[0].mxu0
        %v1673 = vpop.f32.mrb[0].mxu0
        %v1674 = vadd.f32 0.0, %v1673
        %v1675 = vpop.f32.mrb[0].mxu0
        %1676 = vmatprep.mubr.bf16.mxu0 0
        %1677 = vmatmul.mubr.bf16.gmra.mrb[0].mxu0 %v1558
        %v1678 = vpop.f32.mrb[0].mxu0
        %v1679 = vadd.f32 0.0, %v1678
        %v1680 = vpop.f32.mrb[0].mxu0
        %v1681 = vpop.f32.mrb[0].mxu0
        %v1682 = vadd.f32 0.0, %v1681
        %v1683 = vpop.f32.mrb[0].mxu0
        %1684 = vdwg.mxu0
        %v1685 = vadd.f32 %v1520, %v1647
        %v1686 = vadd.f32 %v1521, %v1650
        %v1687 = vadd.f32 %v1522, %v1655
        %v1688 = vadd.f32 %v1523, %v1658
        %v1689 = vadd.f32 %v1524, %v1663
        %v1690 = vadd.f32 %v1525, %v1666
        %v1691 = vadd.f32 %v1526, %v1671
        %v1692 = vadd.f32 %v1527, %v1674
        %v1693 = vadd.f32 %v1528, %v1679
        %v1694 = vadd.f32 %v1529, %v1682
        %s1695 = scalar_lea.vmem [#allocation2], 384
        %v1696 = vld [vmem:[%s1695] sm:$0xf]
        %v1697 = vld [vmem:[%s1695 + $0x4] sm:$0xf]
        %v1698 = vld [vmem:[%s1695 + $0x8] sm:$0xf]
        %v1699 = vld [vmem:[%s1695 + $0xc] sm:$0xf]
        %v1700 = vld [vmem:[%s1695 + $0x10] sm:$0xf]
        %v1701 = vld [vmem:[%s1695 + $0x14] sm:$0xf]
        %v1702 = vld [vmem:[%s1695 + $0x18] sm:$0xf]
        %v1703 = vld [vmem:[%s1695 + $0x1c] sm:$0xf]
        %v1704 = vld [vmem:[%s1695 + $0x20] sm:$0xf]
        %v1705 = vld [vmem:[%s1695 + $0x24] sm:$0xf]
        %v1706 = vld [vmem:[%s1695 + $0x28] sm:$0xf]
        %v1707 = vld [vmem:[%s1695 + $0x2c] sm:$0xf]
        %v1708 = vld [vmem:[%s1695 + $0x30] sm:$0xf]
        %v1709 = vld [vmem:[%s1695 + $0x34] sm:$0xf]
        %v1710 = vld [vmem:[%s1695 + $0x38] sm:$0xf]
        %v1711 = vld [vmem:[%s1695 + $0x3c] sm:$0xf]
        %vm1713 = vcmask 1045504
        %v1714 = vrot.slane %v684, 2
        %v1715 = vrot.slane %v685, 2
        %v1716 = vsel %vm1713, %v1714, %v1715
        %v1717 = vrot.slane %v686, 2
        %v1718 = vsel %vm1713, %v1715, %v1717
        %v1719 = vrot.slane %v687, 2
        %v1720 = vsel %vm1713, %v1717, %v1719
        %v1721 = vrot.slane %v688, 2
        %v1722 = vsel %vm1713, %v1719, %v1721
        %v1723 = vrot.slane %v689, 2
        %v1724 = vsel %vm1713, %v1721, %v1723
        %v1746 = vunpack.c.l.b16 %v1696
        %v1747 = vunpack.c.l.b16 %v1697
        %v1748 = vunpack.c.l.b16 %v1698
        %v1749 = vunpack.c.l.b16 %v1699
        %v1750 = vunpack.c.l.b16 %v1700
        %v1751 = vunpack.c.l.b16 %v1701
        %v1752 = vunpack.c.l.b16 %v1702
        %v1753 = vunpack.c.l.b16 %v1703
        %v1754 = vunpack.c.l.b16 %v1704
        %v1755 = vunpack.c.l.b16 %v1705
        %v1756 = vunpack.c.l.b16 %v1706
        %v1757 = vunpack.c.l.b16 %v1707
        %v1758 = vunpack.c.l.b16 %v1708
        %v1759 = vunpack.c.l.b16 %v1709
        %v1760 = vunpack.c.l.b16 %v1710
        %v1761 = vunpack.c.l.b16 %v1711
        %v1762 = vpack.c.b16 %v1747, %v1746
        %v1763 = vpack.c.b16 %v1749, %v1748
        %v1764 = vpack.c.b16 %v1751, %v1750
        %v1765 = vpack.c.b16 %v1753, %v1752
        %v1766 = vpack.c.b16 %v1755, %v1754
        %v1767 = vpack.c.b16 %v1757, %v1756
        %v1768 = vpack.c.b16 %v1759, %v1758
        %v1769 = vpack.c.b16 %v1761, %v1760
        %1778 = vmatprep.subr.bf16.mxu0 0
        %1779 = vmatpush1.bf16.msra.mxu0 %v1762
        %1780 = vmatprep.subr.bf16.mxu0 0
        %1781 = vmatpush1.bf16.msra.mxu0 %v1763
        %1782 = vmatprep.subr.bf16.mxu0 0
        %1783 = vmatpush1.bf16.msra.mxu0 %v1764
        %1784 = vmatprep.subr.bf16.mxu0 0
        %1785 = vmatpush1.bf16.msra.mxu0 %v1765
        %1786 = vmatprep.subr.bf16.mxu0 0
        %1787 = vmatpush1.bf16.msra.mxu0 %v1766
        %1788 = vmatprep.subr.bf16.mxu0 0
        %1789 = vmatpush1.bf16.msra.mxu0 %v1767
        %1790 = vmatprep.subr.bf16.mxu0 0
        %1791 = vmatpush1.bf16.msra.mxu0 %v1768
        %1792 = vmatprep.subr.bf16.mxu0 0
        %1793 = vmatpush1.bf16.msra.mxu0 %v1769
        %1794 = vmatprep.subr.bf16.mxu0 0
        %1795 = vmatpush1.bf16.msra.mxu0 0
        %1796 = vmatprep.subr.bf16.mxu0 0
        %1797 = vmatpush1.bf16.msra.mxu0 0
        %1798 = vmatprep.subr.bf16.mxu0 0
        %1799 = vmatpush1.bf16.msra.mxu0 0
        %1800 = vmatprep.subr.bf16.mxu0 0
        %1801 = vmatpush1.bf16.msra.mxu0 0
        %1802 = vmatprep.subr.bf16.mxu0 0
        %1803 = vmatpush1.bf16.msra.mxu0 0
        %1804 = vmatprep.subr.bf16.mxu0 0
        %1805 = vmatpush1.bf16.msra.mxu0 0
        %1806 = vmatprep.subr.bf16.mxu0 0
        %1807 = vmatpush1.bf16.msra.mxu0 0
        %1808 = vmatprep.subr.bf16.mxu0 0
        %1809 = vmatpush1.bf16.msra.mxu0 0
        %1810 = vmatprep.mubr.bf16.mxu0 0
        %1811 = vmatmul.mubr.bf16.gmra.mrb[0].mxu0 %v1716
        %v1812 = vpop.f32.mrb[0].mxu0
        %v1813 = vadd.f32 0.0, %v1812
        %v1814 = vpop.f32.mrb[0].mxu0
        %v1815 = vpop.f32.mrb[0].mxu0
        %v1816 = vadd.f32 0.0, %v1815
        %v1817 = vpop.f32.mrb[0].mxu0
        %1818 = vmatprep.mubr.bf16.mxu0 0
        %1819 = vmatmul.mubr.bf16.gmra.mrb[0].mxu0 %v1718
        %v1820 = vpop.f32.mrb[0].mxu0
        %v1821 = vadd.f32 0.0, %v1820
        %v1822 = vpop.f32.mrb[0].mxu0
        %v1823 = vpop.f32.mrb[0].mxu0
        %v1824 = vadd.f32 0.0, %v1823
        %v1825 = vpop.f32.mrb[0].mxu0
        %1826 = vmatprep.mubr.bf16.mxu0 0
        %1827 = vmatmul.mubr.bf16.gmra.mrb[0].mxu0 %v1720
        %v1828 = vpop.f32.mrb[0].mxu0
        %v1829 = vadd.f32 0.0, %v1828
        %v1830 = vpop.f32.mrb[0].mxu0
        %v1831 = vpop.f32.mrb[0].mxu0
        %v1832 = vadd.f32 0.0, %v1831
        %v1833 = vpop.f32.mrb[0].mxu0
        %1834 = vmatprep.mubr.bf16.mxu0 0
        %1835 = vmatmul.mubr.bf16.gmra.mrb[0].mxu0 %v1722
        %v1836 = vpop.f32.mrb[0].mxu0
        %v1837 = vadd.f32 0.0, %v1836
        %v1838 = vpop.f32.mrb[0].mxu0
        %v1839 = vpop.f32.mrb[0].mxu0
        %v1840 = vadd.f32 0.0, %v1839
        %v1841 = vpop.f32.mrb[0].mxu0
        %1842 = vmatprep.mubr.bf16.mxu0 0
        %1843 = vmatmul.mubr.bf16.gmra.mrb[0].mxu0 %v1724
        %v1844 = vpop.f32.mrb[0].mxu0
        %v1845 = vadd.f32 0.0, %v1844
        %v1846 = vpop.f32.mrb[0].mxu0
        %v1847 = vpop.f32.mrb[0].mxu0
        %v1848 = vadd.f32 0.0, %v1847
        %v1849 = vpop.f32.mrb[0].mxu0
        %1850 = vdwg.mxu0
        %v1851 = vadd.f32 %v1685, %v1813
        %v1852 = vadd.f32 %v1686, %v1816
        %v1853 = vadd.f32 %v1687, %v1821
        %v1854 = vadd.f32 %v1688, %v1824
        %v1855 = vadd.f32 %v1689, %v1829
        %v1856 = vadd.f32 %v1690, %v1832
        %v1857 = vadd.f32 %v1691, %v1837
        %v1858 = vadd.f32 %v1692, %v1840
        %v1859 = vadd.f32 %v1693, %v1845
        %v1860 = vadd.f32 %v1694, %v1848
        %s1861 = scalar_lea.vmem [#allocation2], 448
        %v1862 = vld [vmem:[%s1861] sm:$0xf]
        %v1863 = vld [vmem:[%s1861 + $0x4] sm:$0xf]
        %v1864 = vld [vmem:[%s1861 + $0x8] sm:$0xf]
        %v1865 = vld [vmem:[%s1861 + $0xc] sm:$0xf]
        %v1866 = vld [vmem:[%s1861 + $0x10] sm:$0xf]
        %v1867 = vld [vmem:[%s1861 + $0x14] sm:$0xf]
        %v1868 = vld [vmem:[%s1861 + $0x18] sm:$0xf]
        %v1869 = vld [vmem:[%s1861 + $0x1c] sm:$0xf]
        %v1870 = vld [vmem:[%s1861 + $0x20] sm:$0xf]
        %v1871 = vld [vmem:[%s1861 + $0x24] sm:$0xf]
        %v1872 = vld [vmem:[%s1861 + $0x28] sm:$0xf]
        %v1873 = vld [vmem:[%s1861 + $0x2c] sm:$0xf]
        %v1874 = vld [vmem:[%s1861 + $0x30] sm:$0xf]
        %v1875 = vld [vmem:[%s1861 + $0x34] sm:$0xf]
        %v1876 = vld [vmem:[%s1861 + $0x38] sm:$0xf]
        %v1877 = vld [vmem:[%s1861 + $0x3c] sm:$0xf]
        %vm1878 = vsmask.f32 5376
        %v1879 = vrot.slane %v736, 2
        %v1880 = vrot.slane %v732, 3
        %v1881 = vor.u32 %v1879, %v1880
        %v1882 = vrot.slane %v744, 2
        %v1883 = vrot.slane %v740, 3
        %v1884 = vor.u32 %v1882, %v1883
        %v1885 = vsel %vm1878, %v1881, %v1884
        %v1886 = vrot.slane %v752, 2
        %v1887 = vrot.slane %v748, 3
        %v1888 = vor.u32 %v1886, %v1887
        %v1889 = vsel %vm1878, %v1884, %v1888
        %v1890 = vrot.slane %v760, 2
        %v1891 = vrot.slane %v756, 3
        %v1892 = vor.u32 %v1890, %v1891
        %v1893 = vsel %vm1878, %v1888, %v1892
        %v1894 = vrot.slane %v1388, 2
        %v1895 = vrot.slane %v764, 3
        %v1896 = vor.u32 %v1894, %v1895
        %v1897 = vsel %vm1878, %v1892, %v1896
        %v1899 = vshrl.u32 %v689, 16
        %v1901 = vrot.slane %v1899, 2
        %v1902 = vshll.u32 %v689, 16
        %v1904 = vrot.slane %v1902, 3
        %v1905 = vor.u32 %v1901, %v1904
        %v1906 = vsel %vm1878, %v1896, %v1905
        %v1928 = vunpack.c.l.b16 %v1862
        %v1929 = vunpack.c.l.b16 %v1863
        %v1930 = vunpack.c.l.b16 %v1864
        %v1931 = vunpack.c.l.b16 %v1865
        %v1932 = vunpack.c.l.b16 %v1866
        %v1933 = vunpack.c.l.b16 %v1867
        %v1934 = vunpack.c.l.b16 %v1868
        %v1935 = vunpack.c.l.b16 %v1869
        %v1936 = vunpack.c.l.b16 %v1870
        %v1937 = vunpack.c.l.b16 %v1871
        %v1938 = vunpack.c.l.b16 %v1872
        %v1939 = vunpack.c.l.b16 %v1873
        %v1940 = vunpack.c.l.b16 %v1874
        %v1941 = vunpack.c.l.b16 %v1875
        %v1942 = vunpack.c.l.b16 %v1876
        %v1943 = vunpack.c.l.b16 %v1877
        %v1944 = vpack.c.b16 %v1929, %v1928
        %v1945 = vpack.c.b16 %v1931, %v1930
        %v1946 = vpack.c.b16 %v1933, %v1932
        %v1947 = vpack.c.b16 %v1935, %v1934
        %v1948 = vpack.c.b16 %v1937, %v1936
        %v1949 = vpack.c.b16 %v1939, %v1938
        %v1950 = vpack.c.b16 %v1941, %v1940
        %v1951 = vpack.c.b16 %v1943, %v1942
        %1960 = vmatprep.subr.bf16.mxu0 0
        %1961 = vmatpush1.bf16.msra.mxu0 %v1944
        %1962 = vmatprep.subr.bf16.mxu0 0
        %1963 = vmatpush1.bf16.msra.mxu0 %v1945
        %1964 = vmatprep.subr.bf16.mxu0 0
        %1965 = vmatpush1.bf16.msra.mxu0 %v1946
        %1966 = vmatprep.subr.bf16.mxu0 0
        %1967 = vmatpush1.bf16.msra.mxu0 %v1947
        %1968 = vmatprep.subr.bf16.mxu0 0
        %1969 = vmatpush1.bf16.msra.mxu0 %v1948
        %1970 = vmatprep.subr.bf16.mxu0 0
        %1971 = vmatpush1.bf16.msra.mxu0 %v1949
        %1972 = vmatprep.subr.bf16.mxu0 0
        %1973 = vmatpush1.bf16.msra.mxu0 %v1950
        %1974 = vmatprep.subr.bf16.mxu0 0
        %1975 = vmatpush1.bf16.msra.mxu0 %v1951
        %1976 = vmatprep.subr.bf16.mxu0 0
        %1977 = vmatpush1.bf16.msra.mxu0 0
        %1978 = vmatprep.subr.bf16.mxu0 0
        %1979 = vmatpush1.bf16.msra.mxu0 0
        %1980 = vmatprep.subr.bf16.mxu0 0
        %1981 = vmatpush1.bf16.msra.mxu0 0
        %1982 = vmatprep.subr.bf16.mxu0 0
        %1983 = vmatpush1.bf16.msra.mxu0 0
        %1984 = vmatprep.subr.bf16.mxu0 0
        %1985 = vmatpush1.bf16.msra.mxu0 0
        %1986 = vmatprep.subr.bf16.mxu0 0
        %1987 = vmatpush1.bf16.msra.mxu0 0
        %1988 = vmatprep.subr.bf16.mxu0 0
        %1989 = vmatpush1.bf16.msra.mxu0 0
        %1990 = vmatprep.subr.bf16.mxu0 0
        %1991 = vmatpush1.bf16.msra.mxu0 0
        %1992 = vmatprep.mubr.bf16.mxu0 0
        %1993 = vmatmul.mubr.bf16.gmra.mrb[0].mxu0 %v1885
        %v1994 = vpop.f32.mrb[0].mxu0
        %v1995 = vadd.f32 0.0, %v1994
        %v1996 = vpop.f32.mrb[0].mxu0
        %v1997 = vpop.f32.mrb[0].mxu0
        %v1998 = vadd.f32 0.0, %v1997
        %v1999 = vpop.f32.mrb[0].mxu0
        %2000 = vmatprep.mubr.bf16.mxu0 0
        %2001 = vmatmul.mubr.bf16.gmra.mrb[0].mxu0 %v1889
        %v2002 = vpop.f32.mrb[0].mxu0
        %v2003 = vadd.f32 0.0, %v2002
        %v2004 = vpop.f32.mrb[0].mxu0
        %v2005 = vpop.f32.mrb[0].mxu0
        %v2006 = vadd.f32 0.0, %v2005
        %v2007 = vpop.f32.mrb[0].mxu0
        %2008 = vmatprep.mubr.bf16.mxu0 0
        %2009 = vmatmul.mubr.bf16.gmra.mrb[0].mxu0 %v1893
        %v2010 = vpop.f32.mrb[0].mxu0
        %v2011 = vadd.f32 0.0, %v2010
        %v2012 = vpop.f32.mrb[0].mxu0
        %v2013 = vpop.f32.mrb[0].mxu0
        %v2014 = vadd.f32 0.0, %v2013
        %v2015 = vpop.f32.mrb[0].mxu0
        %2016 = vmatprep.mubr.bf16.mxu0 0
        %2017 = vmatmul.mubr.bf16.gmra.mrb[0].mxu0 %v1897
        %v2018 = vpop.f32.mrb[0].mxu0
        %v2019 = vadd.f32 0.0, %v2018
        %v2020 = vpop.f32.mrb[0].mxu0
        %v2021 = vpop.f32.mrb[0].mxu0
        %v2022 = vadd.f32 0.0, %v2021
        %v2023 = vpop.f32.mrb[0].mxu0
        %2024 = vmatprep.mubr.bf16.mxu0 0
        %2025 = vmatmul.mubr.bf16.gmra.mrb[0].mxu0 %v1906
        %v2026 = vpop.f32.mrb[0].mxu0
        %v2027 = vadd.f32 0.0, %v2026
        %v2028 = vpop.f32.mrb[0].mxu0
        %v2029 = vpop.f32.mrb[0].mxu0
        %v2030 = vadd.f32 0.0, %v2029
        %v2031 = vpop.f32.mrb[0].mxu0
        %2032 = vdwg.mxu0
        %v2033 = vadd.f32 %v1851, %v1995
        %v2034 = vadd.f32 %v1852, %v1998
        %v2035 = vadd.f32 %v1853, %v2003
        %v2036 = vadd.f32 %v1854, %v2006
        %v2037 = vadd.f32 %v1855, %v2011
        %v2038 = vadd.f32 %v1856, %v2014
        %v2039 = vadd.f32 %v1857, %v2019
        %v2040 = vadd.f32 %v1858, %v2022
        %v2041 = vadd.f32 %v1859, %v2027
        %v2042 = vadd.f32 %v1860, %v2030
        %s2043 = scalar_lea.vmem [#allocation2], 512
        %v2044 = vld [vmem:[%s2043] sm:$0xf]
        %v2045 = vld [vmem:[%s2043 + $0x4] sm:$0xf]
        %v2046 = vld [vmem:[%s2043 + $0x8] sm:$0xf]
        %v2047 = vld [vmem:[%s2043 + $0xc] sm:$0xf]
        %v2048 = vld [vmem:[%s2043 + $0x10] sm:$0xf]
        %v2049 = vld [vmem:[%s2043 + $0x14] sm:$0xf]
        %v2050 = vld [vmem:[%s2043 + $0x18] sm:$0xf]
        %v2051 = vld [vmem:[%s2043 + $0x1c] sm:$0xf]
        %v2052 = vld [vmem:[%s2043 + $0x20] sm:$0xf]
        %v2053 = vld [vmem:[%s2043 + $0x24] sm:$0xf]
        %v2054 = vld [vmem:[%s2043 + $0x28] sm:$0xf]
        %v2055 = vld [vmem:[%s2043 + $0x2c] sm:$0xf]
        %v2056 = vld [vmem:[%s2043 + $0x30] sm:$0xf]
        %v2057 = vld [vmem:[%s2043 + $0x34] sm:$0xf]
        %v2058 = vld [vmem:[%s2043 + $0x38] sm:$0xf]
        %v2059 = vld [vmem:[%s2043 + $0x3c] sm:$0xf]
        %vm2060 = vcmask 1044480
        %v2061 = vrot.slane %v684, 3
        %v2062 = vrot.slane %v685, 3
        %v2063 = vsel %vm2060, %v2061, %v2062
        %v2064 = vrot.slane %v686, 3
        %v2065 = vsel %vm2060, %v2062, %v2064
        %v2066 = vrot.slane %v687, 3
        %v2067 = vsel %vm2060, %v2064, %v2066
        %v2068 = vrot.slane %v688, 3
        %v2069 = vsel %vm2060, %v2066, %v2068
        %v2070 = vrot.slane %v689, 3
        %v2071 = vsel %vm2060, %v2068, %v2070
        %v2093 = vunpack.c.l.b16 %v2044
        %v2094 = vunpack.c.l.b16 %v2045
        %v2095 = vunpack.c.l.b16 %v2046
        %v2096 = vunpack.c.l.b16 %v2047
        %v2097 = vunpack.c.l.b16 %v2048
        %v2098 = vunpack.c.l.b16 %v2049
        %v2099 = vunpack.c.l.b16 %v2050
        %v2100 = vunpack.c.l.b16 %v2051
        %v2101 = vunpack.c.l.b16 %v2052
        %v2102 = vunpack.c.l.b16 %v2053
        %v2103 = vunpack.c.l.b16 %v2054
        %v2104 = vunpack.c.l.b16 %v2055
        %v2105 = vunpack.c.l.b16 %v2056
        %v2106 = vunpack.c.l.b16 %v2057
        %v2107 = vunpack.c.l.b16 %v2058
        %v2108 = vunpack.c.l.b16 %v2059
        %v2109 = vpack.c.b16 %v2094, %v2093
        %v2110 = vpack.c.b16 %v2096, %v2095
        %v2111 = vpack.c.b16 %v2098, %v2097
        %v2112 = vpack.c.b16 %v2100, %v2099
        %v2113 = vpack.c.b16 %v2102, %v2101
        %v2114 = vpack.c.b16 %v2104, %v2103
        %v2115 = vpack.c.b16 %v2106, %v2105
        %v2116 = vpack.c.b16 %v2108, %v2107
        %2125 = vmatprep.subr.bf16.mxu0 0
        %2126 = vmatpush1.bf16.msra.mxu0 %v2109
        %2127 = vmatprep.subr.bf16.mxu0 0
        %2128 = vmatpush1.bf16.msra.mxu0 %v2110
        %2129 = vmatprep.subr.bf16.mxu0 0
        %2130 = vmatpush1.bf16.msra.mxu0 %v2111
        %2131 = vmatprep.subr.bf16.mxu0 0
        %2132 = vmatpush1.bf16.msra.mxu0 %v2112
        %2133 = vmatprep.subr.bf16.mxu0 0
        %2134 = vmatpush1.bf16.msra.mxu0 %v2113
        %2135 = vmatprep.subr.bf16.mxu0 0
        %2136 = vmatpush1.bf16.msra.mxu0 %v2114
        %2137 = vmatprep.subr.bf16.mxu0 0
        %2138 = vmatpush1.bf16.msra.mxu0 %v2115
        %2139 = vmatprep.subr.bf16.mxu0 0
        %2140 = vmatpush1.bf16.msra.mxu0 %v2116
        %2141 = vmatprep.subr.bf16.mxu0 0
        %2142 = vmatpush1.bf16.msra.mxu0 0
        %2143 = vmatprep.subr.bf16.mxu0 0
        %2144 = vmatpush1.bf16.msra.mxu0 0
        %2145 = vmatprep.subr.bf16.mxu0 0
        %2146 = vmatpush1.bf16.msra.mxu0 0
        %2147 = vmatprep.subr.bf16.mxu0 0
        %2148 = vmatpush1.bf16.msra.mxu0 0
        %2149 = vmatprep.subr.bf16.mxu0 0
        %2150 = vmatpush1.bf16.msra.mxu0 0
        %2151 = vmatprep.subr.bf16.mxu0 0
        %2152 = vmatpush1.bf16.msra.mxu0 0
        %2153 = vmatprep.subr.bf16.mxu0 0
        %2154 = vmatpush1.bf16.msra.mxu0 0
        %2155 = vmatprep.subr.bf16.mxu0 0
        %2156 = vmatpush1.bf16.msra.mxu0 0
        %2157 = vmatprep.mubr.bf16.mxu0 0
        %2158 = vmatmul.mubr.bf16.gmra.mrb[0].mxu0 %v2063
        %v2159 = vpop.f32.mrb[0].mxu0
        %v2160 = vadd.f32 0.0, %v2159
        %v2161 = vpop.f32.mrb[0].mxu0
        %v2162 = vpop.f32.mrb[0].mxu0
        %v2163 = vadd.f32 0.0, %v2162
        %v2164 = vpop.f32.mrb[0].mxu0
        %2165 = vmatprep.mubr.bf16.mxu0 0
        %2166 = vmatmul.mubr.bf16.gmra.mrb[0].mxu0 %v2065
        %v2167 = vpop.f32.mrb[0].mxu0
        %v2168 = vadd.f32 0.0, %v2167
        %v2169 = vpop.f32.mrb[0].mxu0
        %v2170 = vpop.f32.mrb[0].mxu0
        %v2171 = vadd.f32 0.0, %v2170
        %v2172 = vpop.f32.mrb[0].mxu0
        %2173 = vmatprep.mubr.bf16.mxu0 0
        %2174 = vmatmul.mubr.bf16.gmra.mrb[0].mxu0 %v2067
        %v2175 = vpop.f32.mrb[0].mxu0
        %v2176 = vadd.f32 0.0, %v2175
        %v2177 = vpop.f32.mrb[0].mxu0
        %v2178 = vpop.f32.mrb[0].mxu0
        %v2179 = vadd.f32 0.0, %v2178
        %v2180 = vpop.f32.mrb[0].mxu0
        %2181 = vmatprep.mubr.bf16.mxu0 0
        %2182 = vmatmul.mubr.bf16.gmra.mrb[0].mxu0 %v2069
        %v2183 = vpop.f32.mrb[0].mxu0
        %v2184 = vadd.f32 0.0, %v2183
        %v2185 = vpop.f32.mrb[0].mxu0
        %v2186 = vpop.f32.mrb[0].mxu0
        %v2187 = vadd.f32 0.0, %v2186
        %v2188 = vpop.f32.mrb[0].mxu0
        %2189 = vmatprep.mubr.bf16.mxu0 0
        %2190 = vmatmul.mubr.bf16.gmra.mrb[0].mxu0 %v2071
        %v2191 = vpop.f32.mrb[0].mxu0
        %v2192 = vadd.f32 0.0, %v2191
        %v2193 = vpop.f32.mrb[0].mxu0
        %v2194 = vpop.f32.mrb[0].mxu0
        %v2195 = vadd.f32 0.0, %v2194
        %v2196 = vpop.f32.mrb[0].mxu0
        %2197 = vdwg.mxu0
        %v2198 = vadd.f32 %v2033, %v2160
        %v2199 = vadd.f32 %v2034, %v2163
        %v2200 = vadd.f32 %v2035, %v2168
        %v2201 = vadd.f32 %v2036, %v2171
        %v2202 = vadd.f32 %v2037, %v2176
        %v2203 = vadd.f32 %v2038, %v2179
        %v2204 = vadd.f32 %v2039, %v2184
        %v2205 = vadd.f32 %v2040, %v2187
        %v2206 = vadd.f32 %v2041, %v2192
        %v2207 = vadd.f32 %v2042, %v2195
        %v2208 = vld [vmem:[%s6] sm:$0x1]
        %v2210 = vlaneseq
        %v2211 = vshrl.u32 %v2210, 7
        %v2212 = vsub.s32 0, %v2211
        %v2213 = vrot.slane %v2208, %v2212
        %v2215 = vmul.f32 %v2198, %v2213
        %v2216 = vmul.f32 %v2199, %v2213
        %v2217 = vmul.f32 %v2200, %v2213
        %v2218 = vmul.f32 %v2201, %v2213
        %v2219 = vmul.f32 %v2202, %v2213
        %v2220 = vmul.f32 %v2203, %v2213
        %v2221 = vmul.f32 %v2204, %v2213
        %v2222 = vmul.f32 %v2205, %v2213
        %v2223 = vmul.f32 %v2206, %v2213
        %v2224 = vmul.f32 %v2207, %v2213
        %v2225 = vld [vmem:[%s7] sm:$0x1]
        %v2227 = vlaneseq
        %v2228 = vshrl.u32 %v2227, 7
        %v2229 = vsub.s32 0, %v2228
        %v2230 = vrot.slane %v2225, %v2229
        %v2232 = vadd.f32 %v2215, %v2230
        %v2233 = vadd.f32 %v2216, %v2230
        %v2234 = vadd.f32 %v2217, %v2230
        %v2235 = vadd.f32 %v2218, %v2230
        %v2236 = vadd.f32 %v2219, %v2230
        %v2237 = vadd.f32 %v2220, %v2230
        %v2238 = vadd.f32 %v2221, %v2230
        %v2239 = vadd.f32 %v2222, %v2230
        %v2240 = vadd.f32 %v2223, %v2230
        %v2241 = vadd.f32 %v2224, %v2230
        %v2242 = vmax.f32 %v2232, 0.0
        %v2243 = vmax.f32 %v2233, 0.0
        %v2244 = vmax.f32 %v2234, 0.0
        %v2245 = vmax.f32 %v2235, 0.0
        %v2246 = vmax.f32 %v2236, 0.0
        %v2247 = vmax.f32 %v2237, 0.0
        %v2248 = vmax.f32 %v2238, 0.0
        %v2249 = vmax.f32 %v2239, 0.0
        %v2250 = vmax.f32 %v2240, 0.0
        %v2251 = vmax.f32 %v2241, 0.0
        %v2252 = vpack.c.bf16 %v2243, %v2242
        %v2253 = vpack.c.bf16 %v2245, %v2244
        %v2254 = vpack.c.bf16 %v2247, %v2246
        %v2255 = vpack.c.bf16 %v2249, %v2248
        %v2256 = vpack.c.bf16 %v2251, %v2250
        %v2262 = vunpack.c.l.b16 %v2252
        %v2263 = vunpack.c.h.b16 %v2252
        %v2264 = vunpack.c.l.b16 %v2253
        %v2265 = vunpack.c.h.b16 %v2253
        %v2266 = vunpack.c.l.b16 %v2254
        %v2267 = vunpack.c.h.b16 %v2254
        %v2268 = vunpack.c.l.b16 %v2255
        %v2269 = vunpack.c.h.b16 %v2255
        %v2270 = vunpack.c.l.b16 %v2256
        %v2271 = vunpack.c.h.b16 %v2256
        %v2272 = vpack.c.b16 %v2262, %v2262
        %v2273 = vpack.c.b16 %v2263, %v2263
        %v2274 = vpack.c.b16 %v2264, %v2264
        %v2275 = vpack.c.b16 %v2265, %v2265
        %v2276 = vpack.c.b16 %v2266, %v2266
        %v2277 = vpack.c.b16 %v2267, %v2267
        %v2278 = vpack.c.b16 %v2268, %v2268
        %v2279 = vpack.c.b16 %v2269, %v2269
        %v2280 = vpack.c.b16 %v2270, %v2270
        %v2281 = vpack.c.b16 %v2271, %v2271
        %2292 = vst [vmem:[%s313] sm:$0xf] %v2272
        %2293 = vst [vmem:[%s313 + $0x4] sm:$0xf] %v2273
        %2294 = vst [vmem:[%s313 + $0x8] sm:$0xf] %v2274
        %2295 = vst [vmem:[%s313 + $0xc] sm:$0xf] %v2275
        %2296 = vst [vmem:[%s313 + $0x10] sm:$0xf] %v2276
        %2297 = vst [vmem:[%s313 + $0x14] sm:$0xf] %v2277
        %2298 = vst [vmem:[%s313 + $0x18] sm:$0xf] %v2278
        %2299 = vst [vmem:[%s313 + $0x1c] sm:$0xf] %v2279
        %2300 = vst [vmem:[%s313 + $0x20] sm:$0xf] %v2280
        %2301 = vst [vmem:[%s313 + $0x24] sm:$0xf] %v2281
        %s2302 = sand.u32 %s204, 1
        %s2303 = scalar_lea.sflag [#allocation4], %s2302
        %s2304 = sand.u32 %s204, 1
        %s2305 = smul.addr %s2304, 40
        %s2306 = scalar_lea.vmem [#allocation5], %s2305
        // Predicated region
        $region57: #{tpu_custom_call.1} parent=51 // pred_check
          %p2307 = pneg %p214
        $region58: #{tpu_custom_call.1} parent=51 // pred_check_branch
          %2309 = sbr.rel (%p2307) target = $region60
        $region59: #{tpu_custom_call.1} parent=51 // pred_region
          %s2311 = ssub.s32 640, 640
          %2312 = vsyncadd %s2303, %s2311
          %s2313 = smul.addr %s23, 10
          %s2314 = smul.addr %s2313, 64
          %s2315 = scalar_lea.hbm %s8, %s2314
          %s2316 = sshll.u32 %s2306, 4
          %s2317 = int_to_ptr.vmem [resolvable:$true] %s2316
          %2322 = dma.vmem_to_hbm [thread:$0]  %s2317, 640, %s2315, %s2303, 64, 64, 4
        $region60: #{tpu_custom_call.1} parent=51 // pred_fallthru
          _
      $region52: #{tpu_custom_call.1} parent=5 // pred_fallthru
        _
      %p2323 = scmp.le.s32.totalorder 2, %s18
      // Predicated region
      $region61: #{tpu_custom_call.1} parent=5 // pred_check
        %p2324 = pneg %p2323
      $region62: #{tpu_custom_call.1} parent=5 // pred_check_branch
        %2326 = sbr.rel (%p2324) target = $region64
      $region63: #{tpu_custom_call.1} parent=5 // pred_region
        %s2327 = ssub.s32 %s18, 2
        // Predicated region
        $region65: #{tpu_custom_call.1} parent=63 // pred_check
          %p2328 = pneg %p220
        $region66: #{tpu_custom_call.1} parent=63 // pred_check_branch
          %2330 = sbr.rel (%p2328) target = $region68
        $region67: #{tpu_custom_call.1} parent=63 // pred_region
          %s2331 = sand.u32 %s205, 1
          %s2332 = scalar_lea.sflag [#allocation4], %s2331
          %s2333 = sand.u32 %s205, 1
          %s2334 = smul.addr %s2333, 40
          %s2335 = scalar_lea.vmem [#allocation5], %s2334
          %2336 = dma.done %s2332, 640
        $region68: #{tpu_custom_call.1} parent=63 // pred_fallthru
          _
      $region64: #{tpu_custom_call.1} parent=5 // pred_fallthru
        _
    $region6: #{tpu_custom_call.1} parent=1 // loop_footer
      %s22 = sadd.s32 1, %s18
    $region7: #{tpu_custom_call.1} parent=1 // loop_footer_branch
      %17 = sbr.rel target = $region3
    $region8: #{tpu_custom_call.1} parent=1 // loop_exit
      _
    %2337 = vsyncpa [#allocation3], 1
    %s2338 = scalar_lea.sflag [#allocation3], 1
    %2339 = vsyncpa %s2338, 1
    %2340 = vsyncpa [#allocation4], 1
    %s2341 = scalar_lea.sflag [#allocation4], 1
    %2342 = vsyncpa %s2341, 1

</llo_original>
